<compile_context>
chip_gen: v5e
topology: v5e:2x2
jax: 0.10.0
libtpu: 0.0.40
codegen_flags: <defaults>
</compile_context>

<pallas_src>
import functools

import jax
import jax.numpy as jnp
from jax.experimental import pallas as pl
from jax.experimental.pallas import tpu as pltpu

_EPS = 1e-5   # nn.InstanceNorm2d default eps
_K = 7        # conv kernel size
_P = 3        # padding


def _round_up(x, m):
    return ((x + m - 1) // m) * m


def _vmem_policy():
    """Returns (block_budget_bytes, vmem_limit_bytes) sized per TPU generation."""
    cap = None
    try:
        cap = getattr(pltpu.get_tpu_info(), "vmem_capacity_bytes", None)
    except Exception:
        cap = None
    if not cap:
        cap = 64 * 1024 * 1024            # conservative: v7x per-TensorCore VMEM
    # Scoped limit we request from Mosaic (leave headroom for its own scratch);
    # v5e/v6e (128 MiB physical) -> 96 MiB, v7x (64 MiB/TC) -> 48 MiB.
    limit = max(32 * 1024 * 1024, min(cap - 16 * 1024 * 1024, 96 * 1024 * 1024))
    budget = (limit * 3) // 4             # fraction the block picker may consume
    return budget, limit


def _pick_block_batch(N, C, HW, FLAT, x_itemsize, budget_bytes):
    """Largest batch tile that fits the VMEM budget, preferring >= 2 grid steps."""
    def block_bytes(bt):
        in_b = 2 * bt * C * HW * x_itemsize    # double-buffered input block
        out_b = 2 * bt * HW * 4                # double-buffered output block
        scr_b = 2 * bt * FLAT * 4              # pad scratch (single copy)
        live_b = 12 * bt * HW * 4              # in-kernel live working set (est.)
        return in_b + out_b + scr_b + live_b

    divisors = [d for d in range(1, N + 1) if N % d == 0]
    fitting = [d for d in divisors if block_bytes(d) <= budget_bytes] or [1]
    # Prefer a grid with >= 4 steps (keeps both v7x TensorCores fed with some
    # slack), then >= 2, else whatever fits; within the chosen class take the
    # largest fitting block (big blocks are the biggest HBM-roofline lever).
    for min_steps in (4, 2, 1):
        cand = [d for d in fitting if N // d >= min_steps]
        if cand:
            return max(cand)
    return max(fitting)


def _spatial_attn_kernel(x_ref, w_ref, b_ref, o_ref, pad_ref, *, W, HW, OFF, BASE):
    # x_ref:   (Bt, C, HW)        VMEM
    # w_ref:   (2*7*7,)           SMEM  (conv weight, [in_ch, kh, kw] flattened)
    # b_ref:   (1,)               SMEM  (conv bias)
    # o_ref:   (Bt, HW)           VMEM  (middle block dim squeezed away)
    # pad_ref: (2, Bt, FLAT)      VMEM scratch, FLAT = OFF + HW + right border
    Bt = x_ref.shape[0]
    C = x_ref.shape[1]
    FLAT = pad_ref.shape[2]

    # ---- channel pooling: mean and max over C ---------------------------
    CC = 8
    if C > CC and C % CC == 0:
        # Chunked accumulation bounds vreg live ranges for large C.
        def pool_body(i, carry):
            run_sum, run_max = carry
            c0 = pl.multiple_of(i * CC, CC)
            chunk = x_ref[:, pl.ds(c0, CC), :].astype(jnp.float32)
            return (run_sum + jnp.sum(chunk, axis=1),
                    jnp.maximum(run_max, jnp.max(chunk, axis=1)))
        init = (jnp.zeros((Bt, HW), jnp.float32),
                jnp.full((Bt, HW), -jnp.inf, jnp.float32))
        ssum, mx = jax.lax.fori_loop(0, C // CC, pool_body, init, unroll=True)
        avg = ssum * (1.0 / C)
    else:
        xv = x_ref[...].astype(jnp.float32)
        avg = jnp.mean(xv, axis=1)
        mx = jnp.max(xv, axis=1)

    # ---- row-padded flat maps -------------------------------------------
    # Zero only the borders (the interior is fully overwritten right after).
    # Re-zeroed every step on purpose: the "parallel" batch axis may be
    # sharded across TensorCores, and only one core ever sees program_id == 0.
    pad_ref[:, :, 0:OFF] = jnp.zeros((2, Bt, OFF), pad_ref.dtype)
    pad_ref[:, :, OFF + HW:FLAT] = jnp.zeros((2, Bt, FLAT - OFF - HW), pad_ref.dtype)
    # OFF is a multiple of 128 -> lane-aligned, unmasked interior stores.
    pad_ref[0, :, OFF:OFF + HW] = avg
    pad_ref[1, :, OFF:OFF + HW] = mx

    # Column index of every flat output position (for dx zero-padding masks).
    col = jax.lax.broadcasted_iota(jnp.int32, (Bt, HW), 1) % W

    # ---- Conv2d(2 -> 1, k=7, stride=1, pad=3, bias=True), unrolled -------
    # tap(c, dy, dx)[p] = pad[c][:, BASE + dy*W + dx + p]; values whose column
    # j + dx - 3 falls outside [0, W) (row wrap-around) are masked to zero.
    # Partial sums are grouped by dx: one mask per dx (6 selects total), and
    # 7 independent chains keep the 4 VALU slots busy.
    parts = []
    for dx in range(_K):
        part = None
        for c in range(2):
            for dy in range(_K):
                w = w_ref[c * _K * _K + dy * _K + dx]
                start = BASE + dy * W + dx
                term = w * pad_ref[c, :, start:start + HW]
                part = term if part is None else part + term
        shift = dx - _P
        if shift != 0:
            mask = jnp.logical_and(col + shift >= 0, col + shift < W)
            part = jnp.where(mask, part, 0.0)
        parts.append(part)

    # Tree-sum the 7 independent partial sums, then add the bias.
    while len(parts) > 1:
        paired = [parts[i] + parts[i + 1] for i in range(0, len(parts) - 1, 2)]
        if len(parts) % 2:
            paired.append(parts[-1])
        parts = paired
    acc = parts[0] + b_ref[0]                      # (Bt, HW)

    # ---- fused double InstanceNorm + sigmoid ------------------------------
    #   IN(IN(acc)) = (acc - m) * rsqrt(v+eps) * rsqrt(v/(v+eps) + eps)
    m = jnp.mean(acc, axis=1, keepdims=True)
    d = acc - m
    v = jnp.mean(d * d, axis=1, keepdims=True)
    scale = jax.lax.rsqrt(v + _EPS) * jax.lax.rsqrt(v / (v + _EPS) + _EPS)

    o_ref[...] = jax.nn.sigmoid(d * scale).astype(o_ref.dtype)


def spatial_attention_pallas(x, w_flat, b):
    """x: (N, C, H, W) f32/bf16, w_flat: (2*7*7,) f32, b: (1,) f32 -> (N, 1, H, W) f32."""
    N, C, H, W = x.shape
    HW = H * W
    PB = _P * W + _P                        # needed zero margin on each side
    OFF = _round_up(PB, 128)                # 128-aligned interior start
    FLAT = _round_up(OFF + HW + PB, 128)    # lane-dense scratch width
    BASE = OFF - PB                         # flat offset of tap (dy=0, dx=0)

    budget, vmem_limit = _vmem_policy()
    Bt = _pick_block_batch(N, C, HW, FLAT, x.dtype.itemsize, budget)

    x_flat = x.reshape(N, C, HW)            # free (row-major contiguous)

    kernel = functools.partial(_spatial_attn_kernel, W=W, HW=HW, OFF=OFF, BASE=BASE)
    out_flat = pl.pallas_call(
        kernel,
        out_shape=jax.ShapeDtypeStruct((N, 1, HW), jnp.float32),
        grid_spec=pltpu.PrefetchScalarGridSpec(
            num_scalar_prefetch=0,
            grid=(N // Bt,),
            in_specs=[
                pl.BlockSpec((Bt, C, HW), lambda n: (n, 0, 0)),
                pl.BlockSpec(memory_space=pltpu.MemorySpace.SMEM),
                pl.BlockSpec(memory_space=pltpu.MemorySpace.SMEM),
            ],
            # Middle dim squeezed so Bt is a free leading block dim (no
            # multiple-of-8 constraint) and small N can still give >= 2 steps.
            out_specs=pl.BlockSpec((Bt, None, HW), lambda n: (n, 0, 0)),
            scratch_shapes=[
                pltpu.VMEM((2, Bt, FLAT), jnp.float32),
            ],
        ),
        compiler_params=pltpu.CompilerParams(
            dimension_semantics=("parallel",),
            vmem_limit_bytes=vmem_limit,
        ),
    )(x_flat, w_flat, b)

    return out_flat.reshape(N, 1, H, W)


def spatial_attention_ref(x, w_flat, b):
    """Pure-JAX reference matching the PyTorch module (double IN applied literally)."""
    x = x.astype(jnp.float32)
    avg = jnp.mean(x, axis=1, keepdims=True)
    mx = jnp.max(x, axis=1, keepdims=True)
    cat = jnp.concatenate([avg, mx], axis=1)                     # (N, 2, H, W)
    w = w_flat.reshape(1, 2, _K, _K)
    y = jax.lax.conv_general_dilated(
        cat, w, window_strides=(1, 1), padding=[(_P, _P), (_P, _P)],
        dimension_numbers=("NCHW", "OIHW", "NCHW"),
        precision=jax.lax.Precision.HIGHEST) + b.reshape(1, 1, 1, 1)

    def inorm(z):
        m = jnp.mean(z, axis=(2, 3), keepdims=True)
        v = jnp.mean((z - m) ** 2, axis=(2, 3), keepdims=True)
        return (z - m) / jnp.sqrt(v + _EPS)

    return jax.nn.sigmoid(inorm(inorm(y)))


if __name__ == "__main__":
    N, C, H, W = 2, 4, 16, 16
    key = jax.random.PRNGKey(0)
    kx, kw, kb = jax.random.split(key, 3)

    x = jax.random.normal(kx, (N, C, H, W), jnp.float32)

    # Deterministic Conv2d(2, 1, 7) parameter init (kaiming-uniform-like bounds).
    fan_in = 2 * _K * _K
    bound = 1.0 / (fan_in ** 0.5)
    w_flat = jax.random.uniform(kw, (fan_in,), jnp.float32, -bound, bound)
    b = jax.random.uniform(kb, (1,), jnp.float32, -bound, bound)

    out = jax.block_until_ready(spatial_attention_pallas(x, w_flat, b))
    assert out.shape == (N, 1, H, W)

    ref = spatial_attention_ref(x, w_flat, b)
    err = float(jnp.max(jnp.abs(out - ref)))
    if err > 2e-3:
        raise AssertionError(f"Pallas vs reference mismatch: max abs err = {err}")

    print("KERNEL_OK")
</pallas_src>

<mosaic_0001>
module attributes {stable_mosaic.version = 11 : i64} {
  func.func @_spatial_attn_kernel(%arg0: i32, %arg1: memref<1x4x256xf32, #tpu.memory_space<vmem>>, %arg2: memref<98xf32, #tpu.memory_space<smem>>, %arg3: memref<1xf32, #tpu.memory_space<smem>>, %arg4: memref<1x1x256xf32, #tpu.memory_space<vmem>>, %arg5: memref<2x1x512xf32, #tpu.memory_space<vmem>>) attributes {dimension_semantics = [#tpu.dimension_semantics<parallel>], iteration_bounds = array<i64: 2>, scalar_prefetch = 0 : i64, scratch_operands = 1 : i64, tpu.core_type = #tpu.core_type<tc>, window_params = [{transform_indices = @transform_0, window_bounds = array<i64: 1, 4, 256>}, {transform_indices = @transform_1, window_bounds = array<i64: 98>}, {transform_indices = @transform_2, window_bounds = array<i64: 1>}, {transform_indices = @transform_3, window_bounds = array<i64: 1, 1, 256>}]} {
    %c0 = arith.constant 0 : index
    %c0_0 = arith.constant 0 : index
    %c0_1 = arith.constant 0 : index
    %0 = vector.load %arg1[%c0, %c0_0, %c0_1] : memref<1x4x256xf32, #tpu.memory_space<vmem>>, vector<1x4x256xf32>
    %cst = arith.constant dense<0.000000e+00> : vector<1x256xf32>
    %1 = vector.multi_reduction <add>, %0, %cst [1] : vector<1x4x256xf32> to vector<1x256xf32>
    %cst_2 = arith.constant 4.000000e+00 : f32
    %2 = vector.broadcast %cst_2 : f32 to vector<1x256xf32>
    %3 = arith.divf %1, %2 : vector<1x256xf32>
    %cst_3 = arith.constant dense<0xFF800000> : vector<1x256xf32>
    %4 = vector.multi_reduction <maximumf>, %0, %cst_3 [1] : vector<1x4x256xf32> to vector<1x256xf32>
    %cst_4 = arith.constant 0.000000e+00 : f32
    %5 = vector.broadcast %cst_4 : f32 to vector<2x1x128xf32>
    %c0_5 = arith.constant 0 : index
    %c0_6 = arith.constant 0 : index
    %c0_7 = arith.constant 0 : index
    %6 = vector.load %arg5[%c0_5, %c0_6, %c0_7] : memref<2x1x512xf32, #tpu.memory_space<vmem>>, vector<2x1x128xf32>
    tpu.vector_store %arg5[%c0_5, %c0_6, %c0_7], %5 {strides = array<i32>} : memref<2x1x512xf32, #tpu.memory_space<vmem>>, vector<2x1x128xf32>,
    %cst_8 = arith.constant 0.000000e+00 : f32
    %7 = vector.broadcast %cst_8 : f32 to vector<2x1x128xf32>
    %c0_9 = arith.constant 0 : index
    %c0_10 = arith.constant 0 : index
    %c384 = arith.constant 384 : index
    %8 = vector.load %arg5[%c0_9, %c0_10, %c384] : memref<2x1x512xf32, #tpu.memory_space<vmem>>, vector<2x1x128xf32>
    tpu.vector_store %arg5[%c0_9, %c0_10, %c384], %7 {strides = array<i32>} : memref<2x1x512xf32, #tpu.memory_space<vmem>>, vector<2x1x128xf32>,
    %c0_11 = arith.constant 0 : index
    %c0_12 = arith.constant 0 : index
    %c128 = arith.constant 128 : index
    %9 = vector.load %arg5[%c0_11, %c0_12, %c128] : memref<2x1x512xf32, #tpu.memory_space<vmem>>, vector<1x1x256xf32>
    %10 = vector.shape_cast %9 : vector<1x1x256xf32> to vector<1x256xf32>
    %11 = vector.shape_cast %3 : vector<1x256xf32> to vector<1x1x256xf32>
    tpu.vector_store %arg5[%c0_11, %c0_12, %c128], %11 {strides = array<i32>} : memref<2x1x512xf32, #tpu.memory_space<vmem>>, vector<1x1x256xf32>,
    %c1 = arith.constant 1 : index
    %c0_13 = arith.constant 0 : index
    %c128_14 = arith.constant 128 : index
    %12 = vector.load %arg5[%c1, %c0_13, %c128_14] : memref<2x1x512xf32, #tpu.memory_space<vmem>>, vector<1x1x256xf32>
    %13 = vector.shape_cast %12 : vector<1x1x256xf32> to vector<1x256xf32>
    %14 = vector.shape_cast %4 : vector<1x256xf32> to vector<1x1x256xf32>
    tpu.vector_store %arg5[%c1, %c0_13, %c128_14], %14 {strides = array<i32>} : memref<2x1x512xf32, #tpu.memory_space<vmem>>, vector<1x1x256xf32>,
    %15 = tpu.iota {dimensions = array<i32: 1>} : vector<1x256xi32>
    %c16_i32 = arith.constant 16 : i32
    %c0_i32 = arith.constant 0 : i32
    %16 = arith.cmpi eq, %c16_i32, %c0_i32 : i32
    %c1_i32 = arith.constant 1 : i32
    %17 = arith.select %16, %c1_i32, %c16_i32 : i32
    %18 = vector.broadcast %17 : i32 to vector<1x256xi32>
    %19 = arith.remsi %15, %18 : vector<1x256xi32>
    %c0_i32_15 = arith.constant 0 : i32
    %20 = vector.broadcast %c0_i32_15 : i32 to vector<1x256xi32>
    %21 = arith.cmpi ne, %19, %20 : vector<1x256xi32>
    %c0_i32_16 = arith.constant 0 : i32
    %22 = vector.broadcast %c0_i32_16 : i32 to vector<1x256xi32>
    %23 = arith.cmpi slt, %19, %22 : vector<1x256xi32>
    %c0_i32_17 = arith.constant 0 : i32
    %24 = arith.cmpi slt, %17, %c0_i32_17 : i32
    %25 = vector.broadcast %24 : i1 to vector<1x256xi1>
    %26 = vector.broadcast %25 : vector<1x256xi1> to vector<1x256xi1>
    %27 = arith.xori %23, %26 : vector<1x256xi1>
    %28 = arith.andi %27, %21 : vector<1x256xi1>
    %29 = vector.broadcast %17 : i32 to vector<1x256xi32>
    %30 = arith.addi %19, %29 : vector<1x256xi32>
    %31 = arith.select %28, %30, %19 : vector<1x256xi1>, vector<1x256xi32>
    %c0_18 = arith.constant 0 : index
    %32 = memref.load %arg2[%c0_18] : memref<98xf32, #tpu.memory_space<smem>>
    %c0_19 = arith.constant 0 : index
    %c0_20 = arith.constant 0 : index
    %c77 = arith.constant 77 : index
    %33 = vector.load %arg5[%c0_19, %c0_20, %c77] : memref<2x1x512xf32, #tpu.memory_space<vmem>>, vector<1x1x256xf32>
    %34 = vector.shape_cast %33 : vector<1x1x256xf32> to vector<1x256xf32>
    %35 = vector.broadcast %32 : f32 to vector<1x256xf32>
    %36 = arith.mulf %35, %34 : vector<1x256xf32>
    %c7 = arith.constant 7 : index
    %37 = memref.load %arg2[%c7] : memref<98xf32, #tpu.memory_space<smem>>
    %c0_21 = arith.constant 0 : index
    %c0_22 = arith.constant 0 : index
    %c93 = arith.constant 93 : index
    %38 = vector.load %arg5[%c0_21, %c0_22, %c93] : memref<2x1x512xf32, #tpu.memory_space<vmem>>, vector<1x1x256xf32>
    %39 = vector.shape_cast %38 : vector<1x1x256xf32> to vector<1x256xf32>
    %40 = vector.broadcast %37 : f32 to vector<1x256xf32>
    %41 = arith.mulf %40, %39 : vector<1x256xf32>
    %42 = arith.addf %36, %41 : vector<1x256xf32>
    %c14 = arith.constant 14 : index
    %43 = memref.load %arg2[%c14] : memref<98xf32, #tpu.memory_space<smem>>
    %c0_23 = arith.constant 0 : index
    %c0_24 = arith.constant 0 : index
    %c109 = arith.constant 109 : index
    %44 = vector.load %arg5[%c0_23, %c0_24, %c109] : memref<2x1x512xf32, #tpu.memory_space<vmem>>, vector<1x1x256xf32>
    %45 = vector.shape_cast %44 : vector<1x1x256xf32> to vector<1x256xf32>
    %46 = vector.broadcast %43 : f32 to vector<1x256xf32>
    %47 = arith.mulf %46, %45 : vector<1x256xf32>
    %48 = arith.addf %42, %47 : vector<1x256xf32>
    %c21 = arith.constant 21 : index
    %49 = memref.load %arg2[%c21] : memref<98xf32, #tpu.memory_space<smem>>
    %c0_25 = arith.constant 0 : index
    %c0_26 = arith.constant 0 : index
    %c125 = arith.constant 125 : index
    %50 = vector.load %arg5[%c0_25, %c0_26, %c125] : memref<2x1x512xf32, #tpu.memory_space<vmem>>, vector<1x1x256xf32>
    %51 = vector.shape_cast %50 : vector<1x1x256xf32> to vector<1x256xf32>
    %52 = vector.broadcast %49 : f32 to vector<1x256xf32>
    %53 = arith.mulf %52, %51 : vector<1x256xf32>
    %54 = arith.addf %48, %53 : vector<1x256xf32>
    %c28 = arith.constant 28 : index
    %55 = memref.load %arg2[%c28] : memref<98xf32, #tpu.memory_space<smem>>
    %c0_27 = arith.constant 0 : index
    %c0_28 = arith.constant 0 : index
    %c141 = arith.constant 141 : index
    %56 = vector.load %arg5[%c0_27, %c0_28, %c141] : memref<2x1x512xf32, #tpu.memory_space<vmem>>, vector<1x1x256xf32>
    %57 = vector.shape_cast %56 : vector<1x1x256xf32> to vector<1x256xf32>
    %58 = vector.broadcast %55 : f32 to vector<1x256xf32>
    %59 = arith.mulf %58, %57 : vector<1x256xf32>
    %60 = arith.addf %54, %59 : vector<1x256xf32>
    %c35 = arith.constant 35 : index
    %61 = memref.load %arg2[%c35] : memref<98xf32, #tpu.memory_space<smem>>
    %c0_29 = arith.constant 0 : index
    %c0_30 = arith.constant 0 : index
    %c157 = arith.constant 157 : index
    %62 = vector.load %arg5[%c0_29, %c0_30, %c157] : memref<2x1x512xf32, #tpu.memory_space<vmem>>, vector<1x1x256xf32>
    %63 = vector.shape_cast %62 : vector<1x1x256xf32> to vector<1x256xf32>
    %64 = vector.broadcast %61 : f32 to vector<1x256xf32>
    %65 = arith.mulf %64, %63 : vector<1x256xf32>
    %66 = arith.addf %60, %65 : vector<1x256xf32>
    %c42 = arith.constant 42 : index
    %67 = memref.load %arg2[%c42] : memref<98xf32, #tpu.memory_space<smem>>
    %c0_31 = arith.constant 0 : index
    %c0_32 = arith.constant 0 : index
    %c173 = arith.constant 173 : index
    %68 = vector.load %arg5[%c0_31, %c0_32, %c173] : memref<2x1x512xf32, #tpu.memory_space<vmem>>, vector<1x1x256xf32>
    %69 = vector.shape_cast %68 : vector<1x1x256xf32> to vector<1x256xf32>
    %70 = vector.broadcast %67 : f32 to vector<1x256xf32>
    %71 = arith.mulf %70, %69 : vector<1x256xf32>
    %72 = arith.addf %66, %71 : vector<1x256xf32>
    %c49 = arith.constant 49 : index
    %73 = memref.load %arg2[%c49] : memref<98xf32, #tpu.memory_space<smem>>
    %c1_33 = arith.constant 1 : index
    %c0_34 = arith.constant 0 : index
    %c77_35 = arith.constant 77 : index
    %74 = vector.load %arg5[%c1_33, %c0_34, %c77_35] : memref<2x1x512xf32, #tpu.memory_space<vmem>>, vector<1x1x256xf32>
    %75 = vector.shape_cast %74 : vector<1x1x256xf32> to vector<1x256xf32>
    %76 = vector.broadcast %73 : f32 to vector<1x256xf32>
    %77 = arith.mulf %76, %75 : vector<1x256xf32>
    %78 = arith.addf %72, %77 : vector<1x256xf32>
    %c56 = arith.constant 56 : index
    %79 = memref.load %arg2[%c56] : memref<98xf32, #tpu.memory_space<smem>>
    %c1_36 = arith.constant 1 : index
    %c0_37 = arith.constant 0 : index
    %c93_38 = arith.constant 93 : index
    %80 = vector.load %arg5[%c1_36, %c0_37, %c93_38] : memref<2x1x512xf32, #tpu.memory_space<vmem>>, vector<1x1x256xf32>
    %81 = vector.shape_cast %80 : vector<1x1x256xf32> to vector<1x256xf32>
    %82 = vector.broadcast %79 : f32 to vector<1x256xf32>
    %83 = arith.mulf %82, %81 : vector<1x256xf32>
    %84 = arith.addf %78, %83 : vector<1x256xf32>
    %c63 = arith.constant 63 : index
    %85 = memref.load %arg2[%c63] : memref<98xf32, #tpu.memory_space<smem>>
    %c1_39 = arith.constant 1 : index
    %c0_40 = arith.constant 0 : index
    %c109_41 = arith.constant 109 : index
    %86 = vector.load %arg5[%c1_39, %c0_40, %c109_41] : memref<2x1x512xf32, #tpu.memory_space<vmem>>, vector<1x1x256xf32>
    %87 = vector.shape_cast %86 : vector<1x1x256xf32> to vector<1x256xf32>
    %88 = vector.broadcast %85 : f32 to vector<1x256xf32>
    %89 = arith.mulf %88, %87 : vector<1x256xf32>
    %90 = arith.addf %84, %89 : vector<1x256xf32>
    %c70 = arith.constant 70 : index
    %91 = memref.load %arg2[%c70] : memref<98xf32, #tpu.memory_space<smem>>
    %c1_42 = arith.constant 1 : index
    %c0_43 = arith.constant 0 : index
    %c125_44 = arith.constant 125 : index
    %92 = vector.load %arg5[%c1_42, %c0_43, %c125_44] : memref<2x1x512xf32, #tpu.memory_space<vmem>>, vector<1x1x256xf32>
    %93 = vector.shape_cast %92 : vector<1x1x256xf32> to vector<1x256xf32>
    %94 = vector.broadcast %91 : f32 to vector<1x256xf32>
    %95 = arith.mulf %94, %93 : vector<1x256xf32>
    %96 = arith.addf %90, %95 : vector<1x256xf32>
    %c77_45 = arith.constant 77 : index
    %97 = memref.load %arg2[%c77_45] : memref<98xf32, #tpu.memory_space<smem>>
    %c1_46 = arith.constant 1 : index
    %c0_47 = arith.constant 0 : index
    %c141_48 = arith.constant 141 : index
    %98 = vector.load %arg5[%c1_46, %c0_47, %c141_48] : memref<2x1x512xf32, #tpu.memory_space<vmem>>, vector<1x1x256xf32>
    %99 = vector.shape_cast %98 : vector<1x1x256xf32> to vector<1x256xf32>
    %100 = vector.broadcast %97 : f32 to vector<1x256xf32>
    %101 = arith.mulf %100, %99 : vector<1x256xf32>
    %102 = arith.addf %96, %101 : vector<1x256xf32>
    %c84 = arith.constant 84 : index
    %103 = memref.load %arg2[%c84] : memref<98xf32, #tpu.memory_space<smem>>
    %c1_49 = arith.constant 1 : index
    %c0_50 = arith.constant 0 : index
    %c157_51 = arith.constant 157 : index
    %104 = vector.load %arg5[%c1_49, %c0_50, %c157_51] : memref<2x1x512xf32, #tpu.memory_space<vmem>>, vector<1x1x256xf32>
    %105 = vector.shape_cast %104 : vector<1x1x256xf32> to vector<1x256xf32>
    %106 = vector.broadcast %103 : f32 to vector<1x256xf32>
    %107 = arith.mulf %106, %105 : vector<1x256xf32>
    %108 = arith.addf %102, %107 : vector<1x256xf32>
    %c91 = arith.constant 91 : index
    %109 = memref.load %arg2[%c91] : memref<98xf32, #tpu.memory_space<smem>>
    %c1_52 = arith.constant 1 : index
    %c0_53 = arith.constant 0 : index
    %c173_54 = arith.constant 173 : index
    %110 = vector.load %arg5[%c1_52, %c0_53, %c173_54] : memref<2x1x512xf32, #tpu.memory_space<vmem>>, vector<1x1x256xf32>
    %111 = vector.shape_cast %110 : vector<1x1x256xf32> to vector<1x256xf32>
    %112 = vector.broadcast %109 : f32 to vector<1x256xf32>
    %113 = arith.mulf %112, %111 : vector<1x256xf32>
    %114 = arith.addf %108, %113 : vector<1x256xf32>
    %c-3_i32 = arith.constant -3 : i32
    %115 = vector.broadcast %c-3_i32 : i32 to vector<1x256xi32>
    %116 = arith.addi %31, %115 : vector<1x256xi32>
    %c0_i32_55 = arith.constant 0 : i32
    %117 = vector.broadcast %c0_i32_55 : i32 to vector<1x256xi32>
    %118 = arith.cmpi sge, %116, %117 : vector<1x256xi32>
    %c-3_i32_56 = arith.constant -3 : i32
    %119 = vector.broadcast %c-3_i32_56 : i32 to vector<1x256xi32>
    %120 = arith.addi %31, %119 : vector<1x256xi32>
    %c16_i32_57 = arith.constant 16 : i32
    %121 = vector.broadcast %c16_i32_57 : i32 to vector<1x256xi32>
    %122 = arith.cmpi slt, %120, %121 : vector<1x256xi32>
    %123 = arith.andi %118, %122 : vector<1x256xi1>
    %cst_58 = arith.constant 0.000000e+00 : f32
    %124 = vector.broadcast %cst_58 : f32 to vector<1x256xf32>
    %125 = arith.select %123, %114, %124 : vector<1x256xi1>, vector<1x256xf32>
    %c1_59 = arith.constant 1 : index
    %126 = memref.load %arg2[%c1_59] : memref<98xf32, #tpu.memory_space<smem>>
    %c0_60 = arith.constant 0 : index
    %c0_61 = arith.constant 0 : index
    %c78 = arith.constant 78 : index
    %127 = vector.load %arg5[%c0_60, %c0_61, %c78] : memref<2x1x512xf32, #tpu.memory_space<vmem>>, vector<1x1x256xf32>
    %128 = vector.shape_cast %127 : vector<1x1x256xf32> to vector<1x256xf32>
    %129 = vector.broadcast %126 : f32 to vector<1x256xf32>
    %130 = arith.mulf %129, %128 : vector<1x256xf32>
    %c8 = arith.constant 8 : index
    %131 = memref.load %arg2[%c8] : memref<98xf32, #tpu.memory_space<smem>>
    %c0_62 = arith.constant 0 : index
    %c0_63 = arith.constant 0 : index
    %c94 = arith.constant 94 : index
    %132 = vector.load %arg5[%c0_62, %c0_63, %c94] : memref<2x1x512xf32, #tpu.memory_space<vmem>>, vector<1x1x256xf32>
    %133 = vector.shape_cast %132 : vector<1x1x256xf32> to vector<1x256xf32>
    %134 = vector.broadcast %131 : f32 to vector<1x256xf32>
    %135 = arith.mulf %134, %133 : vector<1x256xf32>
    %136 = arith.addf %130, %135 : vector<1x256xf32>
    %c15 = arith.constant 15 : index
    %137 = memref.load %arg2[%c15] : memref<98xf32, #tpu.memory_space<smem>>
    %c0_64 = arith.constant 0 : index
    %c0_65 = arith.constant 0 : index
    %c110 = arith.constant 110 : index
    %138 = vector.load %arg5[%c0_64, %c0_65, %c110] : memref<2x1x512xf32, #tpu.memory_space<vmem>>, vector<1x1x256xf32>
    %139 = vector.shape_cast %138 : vector<1x1x256xf32> to vector<1x256xf32>
    %140 = vector.broadcast %137 : f32 to vector<1x256xf32>
    %141 = arith.mulf %140, %139 : vector<1x256xf32>
    %142 = arith.addf %136, %141 : vector<1x256xf32>
    %c22 = arith.constant 22 : index
    %143 = memref.load %arg2[%c22] : memref<98xf32, #tpu.memory_space<smem>>
    %c0_66 = arith.constant 0 : index
    %c0_67 = arith.constant 0 : index
    %c126 = arith.constant 126 : index
    %144 = vector.load %arg5[%c0_66, %c0_67, %c126] : memref<2x1x512xf32, #tpu.memory_space<vmem>>, vector<1x1x256xf32>
    %145 = vector.shape_cast %144 : vector<1x1x256xf32> to vector<1x256xf32>
    %146 = vector.broadcast %143 : f32 to vector<1x256xf32>
    %147 = arith.mulf %146, %145 : vector<1x256xf32>
    %148 = arith.addf %142, %147 : vector<1x256xf32>
    %c29 = arith.constant 29 : index
    %149 = memref.load %arg2[%c29] : memref<98xf32, #tpu.memory_space<smem>>
    %c0_68 = arith.constant 0 : index
    %c0_69 = arith.constant 0 : index
    %c142 = arith.constant 142 : index
    %150 = vector.load %arg5[%c0_68, %c0_69, %c142] : memref<2x1x512xf32, #tpu.memory_space<vmem>>, vector<1x1x256xf32>
    %151 = vector.shape_cast %150 : vector<1x1x256xf32> to vector<1x256xf32>
    %152 = vector.broadcast %149 : f32 to vector<1x256xf32>
    %153 = arith.mulf %152, %151 : vector<1x256xf32>
    %154 = arith.addf %148, %153 : vector<1x256xf32>
    %c36 = arith.constant 36 : index
    %155 = memref.load %arg2[%c36] : memref<98xf32, #tpu.memory_space<smem>>
    %c0_70 = arith.constant 0 : index
    %c0_71 = arith.constant 0 : index
    %c158 = arith.constant 158 : index
    %156 = vector.load %arg5[%c0_70, %c0_71, %c158] : memref<2x1x512xf32, #tpu.memory_space<vmem>>, vector<1x1x256xf32>
    %157 = vector.shape_cast %156 : vector<1x1x256xf32> to vector<1x256xf32>
    %158 = vector.broadcast %155 : f32 to vector<1x256xf32>
    %159 = arith.mulf %158, %157 : vector<1x256xf32>
    %160 = arith.addf %154, %159 : vector<1x256xf32>
    %c43 = arith.constant 43 : index
    %161 = memref.load %arg2[%c43] : memref<98xf32, #tpu.memory_space<smem>>
    %c0_72 = arith.constant 0 : index
    %c0_73 = arith.constant 0 : index
    %c174 = arith.constant 174 : index
    %162 = vector.load %arg5[%c0_72, %c0_73, %c174] : memref<2x1x512xf32, #tpu.memory_space<vmem>>, vector<1x1x256xf32>
    %163 = vector.shape_cast %162 : vector<1x1x256xf32> to vector<1x256xf32>
    %164 = vector.broadcast %161 : f32 to vector<1x256xf32>
    %165 = arith.mulf %164, %163 : vector<1x256xf32>
    %166 = arith.addf %160, %165 : vector<1x256xf32>
    %c50 = arith.constant 50 : index
    %167 = memref.load %arg2[%c50] : memref<98xf32, #tpu.memory_space<smem>>
    %c1_74 = arith.constant 1 : index
    %c0_75 = arith.constant 0 : index
    %c78_76 = arith.constant 78 : index
    %168 = vector.load %arg5[%c1_74, %c0_75, %c78_76] : memref<2x1x512xf32, #tpu.memory_space<vmem>>, vector<1x1x256xf32>
    %169 = vector.shape_cast %168 : vector<1x1x256xf32> to vector<1x256xf32>
    %170 = vector.broadcast %167 : f32 to vector<1x256xf32>
    %171 = arith.mulf %170, %169 : vector<1x256xf32>
    %172 = arith.addf %166, %171 : vector<1x256xf32>
    %c57 = arith.constant 57 : index
    %173 = memref.load %arg2[%c57] : memref<98xf32, #tpu.memory_space<smem>>
    %c1_77 = arith.constant 1 : index
    %c0_78 = arith.constant 0 : index
    %c94_79 = arith.constant 94 : index
    %174 = vector.load %arg5[%c1_77, %c0_78, %c94_79] : memref<2x1x512xf32, #tpu.memory_space<vmem>>, vector<1x1x256xf32>
    %175 = vector.shape_cast %174 : vector<1x1x256xf32> to vector<1x256xf32>
    %176 = vector.broadcast %173 : f32 to vector<1x256xf32>
    %177 = arith.mulf %176, %175 : vector<1x256xf32>
    %178 = arith.addf %172, %177 : vector<1x256xf32>
    %c64 = arith.constant 64 : index
    %179 = memref.load %arg2[%c64] : memref<98xf32, #tpu.memory_space<smem>>
    %c1_80 = arith.constant 1 : index
    %c0_81 = arith.constant 0 : index
    %c110_82 = arith.constant 110 : index
    %180 = vector.load %arg5[%c1_80, %c0_81, %c110_82] : memref<2x1x512xf32, #tpu.memory_space<vmem>>, vector<1x1x256xf32>
    %181 = vector.shape_cast %180 : vector<1x1x256xf32> to vector<1x256xf32>
    %182 = vector.broadcast %179 : f32 to vector<1x256xf32>
    %183 = arith.mulf %182, %181 : vector<1x256xf32>
    %184 = arith.addf %178, %183 : vector<1x256xf32>
    %c71 = arith.constant 71 : index
    %185 = memref.load %arg2[%c71] : memref<98xf32, #tpu.memory_space<smem>>
    %c1_83 = arith.constant 1 : index
    %c0_84 = arith.constant 0 : index
    %c126_85 = arith.constant 126 : index
    %186 = vector.load %arg5[%c1_83, %c0_84, %c126_85] : memref<2x1x512xf32, #tpu.memory_space<vmem>>, vector<1x1x256xf32>
    %187 = vector.shape_cast %186 : vector<1x1x256xf32> to vector<1x256xf32>
    %188 = vector.broadcast %185 : f32 to vector<1x256xf32>
    %189 = arith.mulf %188, %187 : vector<1x256xf32>
    %190 = arith.addf %184, %189 : vector<1x256xf32>
    %c78_86 = arith.constant 78 : index
    %191 = memref.load %arg2[%c78_86] : memref<98xf32, #tpu.memory_space<smem>>
    %c1_87 = arith.constant 1 : index
    %c0_88 = arith.constant 0 : index
    %c142_89 = arith.constant 142 : index
    %192 = vector.load %arg5[%c1_87, %c0_88, %c142_89] : memref<2x1x512xf32, #tpu.memory_space<vmem>>, vector<1x1x256xf32>
    %193 = vector.shape_cast %192 : vector<1x1x256xf32> to vector<1x256xf32>
    %194 = vector.broadcast %191 : f32 to vector<1x256xf32>
    %195 = arith.mulf %194, %193 : vector<1x256xf32>
    %196 = arith.addf %190, %195 : vector<1x256xf32>
    %c85 = arith.constant 85 : index
    %197 = memref.load %arg2[%c85] : memref<98xf32, #tpu.memory_space<smem>>
    %c1_90 = arith.constant 1 : index
    %c0_91 = arith.constant 0 : index
    %c158_92 = arith.constant 158 : index
    %198 = vector.load %arg5[%c1_90, %c0_91, %c158_92] : memref<2x1x512xf32, #tpu.memory_space<vmem>>, vector<1x1x256xf32>
    %199 = vector.shape_cast %198 : vector<1x1x256xf32> to vector<1x256xf32>
    %200 = vector.broadcast %197 : f32 to vector<1x256xf32>
    %201 = arith.mulf %200, %199 : vector<1x256xf32>
    %202 = arith.addf %196, %201 : vector<1x256xf32>
    %c92 = arith.constant 92 : index
    %203 = memref.load %arg2[%c92] : memref<98xf32, #tpu.memory_space<smem>>
    %c1_93 = arith.constant 1 : index
    %c0_94 = arith.constant 0 : index
    %c174_95 = arith.constant 174 : index
    %204 = vector.load %arg5[%c1_93, %c0_94, %c174_95] : memref<2x1x512xf32, #tpu.memory_space<vmem>>, vector<1x1x256xf32>
    %205 = vector.shape_cast %204 : vector<1x1x256xf32> to vector<1x256xf32>
    %206 = vector.broadcast %203 : f32 to vector<1x256xf32>
    %207 = arith.mulf %206, %205 : vector<1x256xf32>
    %208 = arith.addf %202, %207 : vector<1x256xf32>
    %c-2_i32 = arith.constant -2 : i32
    %209 = vector.broadcast %c-2_i32 : i32 to vector<1x256xi32>
    %210 = arith.addi %31, %209 : vector<1x256xi32>
    %c0_i32_96 = arith.constant 0 : i32
    %211 = vector.broadcast %c0_i32_96 : i32 to vector<1x256xi32>
    %212 = arith.cmpi sge, %210, %211 : vector<1x256xi32>
    %c-2_i32_97 = arith.constant -2 : i32
    %213 = vector.broadcast %c-2_i32_97 : i32 to vector<1x256xi32>
    %214 = arith.addi %31, %213 : vector<1x256xi32>
    %c16_i32_98 = arith.constant 16 : i32
    %215 = vector.broadcast %c16_i32_98 : i32 to vector<1x256xi32>
    %216 = arith.cmpi slt, %214, %215 : vector<1x256xi32>
    %217 = arith.andi %212, %216 : vector<1x256xi1>
    %cst_99 = arith.constant 0.000000e+00 : f32
    %218 = vector.broadcast %cst_99 : f32 to vector<1x256xf32>
    %219 = arith.select %217, %208, %218 : vector<1x256xi1>, vector<1x256xf32>
    %c2 = arith.constant 2 : index
    %220 = memref.load %arg2[%c2] : memref<98xf32, #tpu.memory_space<smem>>
    %c0_100 = arith.constant 0 : index
    %c0_101 = arith.constant 0 : index
    %c79 = arith.constant 79 : index
    %221 = vector.load %arg5[%c0_100, %c0_101, %c79] : memref<2x1x512xf32, #tpu.memory_space<vmem>>, vector<1x1x256xf32>
    %222 = vector.shape_cast %221 : vector<1x1x256xf32> to vector<1x256xf32>
    %223 = vector.broadcast %220 : f32 to vector<1x256xf32>
    %224 = arith.mulf %223, %222 : vector<1x256xf32>
    %c9 = arith.constant 9 : index
    %225 = memref.load %arg2[%c9] : memref<98xf32, #tpu.memory_space<smem>>
    %c0_102 = arith.constant 0 : index
    %c0_103 = arith.constant 0 : index
    %c95 = arith.constant 95 : index
    %226 = vector.load %arg5[%c0_102, %c0_103, %c95] : memref<2x1x512xf32, #tpu.memory_space<vmem>>, vector<1x1x256xf32>
    %227 = vector.shape_cast %226 : vector<1x1x256xf32> to vector<1x256xf32>
    %228 = vector.broadcast %225 : f32 to vector<1x256xf32>
    %229 = arith.mulf %228, %227 : vector<1x256xf32>
    %230 = arith.addf %224, %229 : vector<1x256xf32>
    %c16 = arith.constant 16 : index
    %231 = memref.load %arg2[%c16] : memref<98xf32, #tpu.memory_space<smem>>
    %c0_104 = arith.constant 0 : index
    %c0_105 = arith.constant 0 : index
    %c111 = arith.constant 111 : index
    %232 = vector.load %arg5[%c0_104, %c0_105, %c111] : memref<2x1x512xf32, #tpu.memory_space<vmem>>, vector<1x1x256xf32>
    %233 = vector.shape_cast %232 : vector<1x1x256xf32> to vector<1x256xf32>
    %234 = vector.broadcast %231 : f32 to vector<1x256xf32>
    %235 = arith.mulf %234, %233 : vector<1x256xf32>
    %236 = arith.addf %230, %235 : vector<1x256xf32>
    %c23 = arith.constant 23 : index
    %237 = memref.load %arg2[%c23] : memref<98xf32, #tpu.memory_space<smem>>
    %c0_106 = arith.constant 0 : index
    %c0_107 = arith.constant 0 : index
    %c127 = arith.constant 127 : index
    %238 = vector.load %arg5[%c0_106, %c0_107, %c127] : memref<2x1x512xf32, #tpu.memory_space<vmem>>, vector<1x1x256xf32>
    %239 = vector.shape_cast %238 : vector<1x1x256xf32> to vector<1x256xf32>
    %240 = vector.broadcast %237 : f32 to vector<1x256xf32>
    %241 = arith.mulf %240, %239 : vector<1x256xf32>
    %242 = arith.addf %236, %241 : vector<1x256xf32>
    %c30 = arith.constant 30 : index
    %243 = memref.load %arg2[%c30] : memref<98xf32, #tpu.memory_space<smem>>
    %c0_108 = arith.constant 0 : index
    %c0_109 = arith.constant 0 : index
    %c143 = arith.constant 143 : index
    %244 = vector.load %arg5[%c0_108, %c0_109, %c143] : memref<2x1x512xf32, #tpu.memory_space<vmem>>, vector<1x1x256xf32>
    %245 = vector.shape_cast %244 : vector<1x1x256xf32> to vector<1x256xf32>
    %246 = vector.broadcast %243 : f32 to vector<1x256xf32>
    %247 = arith.mulf %246, %245 : vector<1x256xf32>
    %248 = arith.addf %242, %247 : vector<1x256xf32>
    %c37 = arith.constant 37 : index
    %249 = memref.load %arg2[%c37] : memref<98xf32, #tpu.memory_space<smem>>
    %c0_110 = arith.constant 0 : index
    %c0_111 = arith.constant 0 : index
    %c159 = arith.constant 159 : index
    %250 = vector.load %arg5[%c0_110, %c0_111, %c159] : memref<2x1x512xf32, #tpu.memory_space<vmem>>, vector<1x1x256xf32>
    %251 = vector.shape_cast %250 : vector<1x1x256xf32> to vector<1x256xf32>
    %252 = vector.broadcast %249 : f32 to vector<1x256xf32>
    %253 = arith.mulf %252, %251 : vector<1x256xf32>
    %254 = arith.addf %248, %253 : vector<1x256xf32>
    %c44 = arith.constant 44 : index
    %255 = memref.load %arg2[%c44] : memref<98xf32, #tpu.memory_space<smem>>
    %c0_112 = arith.constant 0 : index
    %c0_113 = arith.constant 0 : index
    %c175 = arith.constant 175 : index
    %256 = vector.load %arg5[%c0_112, %c0_113, %c175] : memref<2x1x512xf32, #tpu.memory_space<vmem>>, vector<1x1x256xf32>
    %257 = vector.shape_cast %256 : vector<1x1x256xf32> to vector<1x256xf32>
    %258 = vector.broadcast %255 : f32 to vector<1x256xf32>
    %259 = arith.mulf %258, %257 : vector<1x256xf32>
    %260 = arith.addf %254, %259 : vector<1x256xf32>
    %c51 = arith.constant 51 : index
    %261 = memref.load %arg2[%c51] : memref<98xf32, #tpu.memory_space<smem>>
    %c1_114 = arith.constant 1 : index
    %c0_115 = arith.constant 0 : index
    %c79_116 = arith.constant 79 : index
    %262 = vector.load %arg5[%c1_114, %c0_115, %c79_116] : memref<2x1x512xf32, #tpu.memory_space<vmem>>, vector<1x1x256xf32>
    %263 = vector.shape_cast %262 : vector<1x1x256xf32> to vector<1x256xf32>
    %264 = vector.broadcast %261 : f32 to vector<1x256xf32>
    %265 = arith.mulf %264, %263 : vector<1x256xf32>
    %266 = arith.addf %260, %265 : vector<1x256xf32>
    %c58 = arith.constant 58 : index
    %267 = memref.load %arg2[%c58] : memref<98xf32, #tpu.memory_space<smem>>
    %c1_117 = arith.constant 1 : index
    %c0_118 = arith.constant 0 : index
    %c95_119 = arith.constant 95 : index
    %268 = vector.load %arg5[%c1_117, %c0_118, %c95_119] : memref<2x1x512xf32, #tpu.memory_space<vmem>>, vector<1x1x256xf32>
    %269 = vector.shape_cast %268 : vector<1x1x256xf32> to vector<1x256xf32>
    %270 = vector.broadcast %267 : f32 to vector<1x256xf32>
    %271 = arith.mulf %270, %269 : vector<1x256xf32>
    %272 = arith.addf %266, %271 : vector<1x256xf32>
    %c65 = arith.constant 65 : index
    %273 = memref.load %arg2[%c65] : memref<98xf32, #tpu.memory_space<smem>>
    %c1_120 = arith.constant 1 : index
    %c0_121 = arith.constant 0 : index
    %c111_122 = arith.constant 111 : index
    %274 = vector.load %arg5[%c1_120, %c0_121, %c111_122] : memref<2x1x512xf32, #tpu.memory_space<vmem>>, vector<1x1x256xf32>
    %275 = vector.shape_cast %274 : vector<1x1x256xf32> to vector<1x256xf32>
    %276 = vector.broadcast %273 : f32 to vector<1x256xf32>
    %277 = arith.mulf %276, %275 : vector<1x256xf32>
    %278 = arith.addf %272, %277 : vector<1x256xf32>
    %c72 = arith.constant 72 : index
    %279 = memref.load %arg2[%c72] : memref<98xf32, #tpu.memory_space<smem>>
    %c1_123 = arith.constant 1 : index
    %c0_124 = arith.constant 0 : index
    %c127_125 = arith.constant 127 : index
    %280 = vector.load %arg5[%c1_123, %c0_124, %c127_125] : memref<2x1x512xf32, #tpu.memory_space<vmem>>, vector<1x1x256xf32>
    %281 = vector.shape_cast %280 : vector<1x1x256xf32> to vector<1x256xf32>
    %282 = vector.broadcast %279 : f32 to vector<1x256xf32>
    %283 = arith.mulf %282, %281 : vector<1x256xf32>
    %284 = arith.addf %278, %283 : vector<1x256xf32>
    %c79_126 = arith.constant 79 : index
    %285 = memref.load %arg2[%c79_126] : memref<98xf32, #tpu.memory_space<smem>>
    %c1_127 = arith.constant 1 : index
    %c0_128 = arith.constant 0 : index
    %c143_129 = arith.constant 143 : index
    %286 = vector.load %arg5[%c1_127, %c0_128, %c143_129] : memref<2x1x512xf32, #tpu.memory_space<vmem>>, vector<1x1x256xf32>
    %287 = vector.shape_cast %286 : vector<1x1x256xf32> to vector<1x256xf32>
    %288 = vector.broadcast %285 : f32 to vector<1x256xf32>
    %289 = arith.mulf %288, %287 : vector<1x256xf32>
    %290 = arith.addf %284, %289 : vector<1x256xf32>
    %c86 = arith.constant 86 : index
    %291 = memref.load %arg2[%c86] : memref<98xf32, #tpu.memory_space<smem>>
    %c1_130 = arith.constant 1 : index
    %c0_131 = arith.constant 0 : index
    %c159_132 = arith.constant 159 : index
    %292 = vector.load %arg5[%c1_130, %c0_131, %c159_132] : memref<2x1x512xf32, #tpu.memory_space<vmem>>, vector<1x1x256xf32>
    %293 = vector.shape_cast %292 : vector<1x1x256xf32> to vector<1x256xf32>
    %294 = vector.broadcast %291 : f32 to vector<1x256xf32>
    %295 = arith.mulf %294, %293 : vector<1x256xf32>
    %296 = arith.addf %290, %295 : vector<1x256xf32>
    %c93_133 = arith.constant 93 : index
    %297 = memref.load %arg2[%c93_133] : memref<98xf32, #tpu.memory_space<smem>>
    %c1_134 = arith.constant 1 : index
    %c0_135 = arith.constant 0 : index
    %c175_136 = arith.constant 175 : index
    %298 = vector.load %arg5[%c1_134, %c0_135, %c175_136] : memref<2x1x512xf32, #tpu.memory_space<vmem>>, vector<1x1x256xf32>
    %299 = vector.shape_cast %298 : vector<1x1x256xf32> to vector<1x256xf32>
    %300 = vector.broadcast %297 : f32 to vector<1x256xf32>
    %301 = arith.mulf %300, %299 : vector<1x256xf32>
    %302 = arith.addf %296, %301 : vector<1x256xf32>
    %c-1_i32 = arith.constant -1 : i32
    %303 = vector.broadcast %c-1_i32 : i32 to vector<1x256xi32>
    %304 = arith.addi %31, %303 : vector<1x256xi32>
    %c0_i32_137 = arith.constant 0 : i32
    %305 = vector.broadcast %c0_i32_137 : i32 to vector<1x256xi32>
    %306 = arith.cmpi sge, %304, %305 : vector<1x256xi32>
    %c-1_i32_138 = arith.constant -1 : i32
    %307 = vector.broadcast %c-1_i32_138 : i32 to vector<1x256xi32>
    %308 = arith.addi %31, %307 : vector<1x256xi32>
    %c16_i32_139 = arith.constant 16 : i32
    %309 = vector.broadcast %c16_i32_139 : i32 to vector<1x256xi32>
    %310 = arith.cmpi slt, %308, %309 : vector<1x256xi32>
    %311 = arith.andi %306, %310 : vector<1x256xi1>
    %cst_140 = arith.constant 0.000000e+00 : f32
    %312 = vector.broadcast %cst_140 : f32 to vector<1x256xf32>
    %313 = arith.select %311, %302, %312 : vector<1x256xi1>, vector<1x256xf32>
    %c3 = arith.constant 3 : index
    %314 = memref.load %arg2[%c3] : memref<98xf32, #tpu.memory_space<smem>>
    %c0_141 = arith.constant 0 : index
    %c0_142 = arith.constant 0 : index
    %c80 = arith.constant 80 : index
    %315 = vector.load %arg5[%c0_141, %c0_142, %c80] : memref<2x1x512xf32, #tpu.memory_space<vmem>>, vector<1x1x256xf32>
    %316 = vector.shape_cast %315 : vector<1x1x256xf32> to vector<1x256xf32>
    %317 = vector.broadcast %314 : f32 to vector<1x256xf32>
    %318 = arith.mulf %317, %316 : vector<1x256xf32>
    %c10 = arith.constant 10 : index
    %319 = memref.load %arg2[%c10] : memref<98xf32, #tpu.memory_space<smem>>
    %c0_143 = arith.constant 0 : index
    %c0_144 = arith.constant 0 : index
    %c96 = arith.constant 96 : index
    %320 = vector.load %arg5[%c0_143, %c0_144, %c96] : memref<2x1x512xf32, #tpu.memory_space<vmem>>, vector<1x1x256xf32>
    %321 = vector.shape_cast %320 : vector<1x1x256xf32> to vector<1x256xf32>
    %322 = vector.broadcast %319 : f32 to vector<1x256xf32>
    %323 = arith.mulf %322, %321 : vector<1x256xf32>
    %324 = arith.addf %318, %323 : vector<1x256xf32>
    %c17 = arith.constant 17 : index
    %325 = memref.load %arg2[%c17] : memref<98xf32, #tpu.memory_space<smem>>
    %c0_145 = arith.constant 0 : index
    %c0_146 = arith.constant 0 : index
    %c112 = arith.constant 112 : index
    %326 = vector.load %arg5[%c0_145, %c0_146, %c112] : memref<2x1x512xf32, #tpu.memory_space<vmem>>, vector<1x1x256xf32>
    %327 = vector.shape_cast %326 : vector<1x1x256xf32> to vector<1x256xf32>
    %328 = vector.broadcast %325 : f32 to vector<1x256xf32>
    %329 = arith.mulf %328, %327 : vector<1x256xf32>
    %330 = arith.addf %324, %329 : vector<1x256xf32>
    %c24 = arith.constant 24 : index
    %331 = memref.load %arg2[%c24] : memref<98xf32, #tpu.memory_space<smem>>
    %c0_147 = arith.constant 0 : index
    %c0_148 = arith.constant 0 : index
    %c128_149 = arith.constant 128 : index
    %332 = vector.load %arg5[%c0_147, %c0_148, %c128_149] : memref<2x1x512xf32, #tpu.memory_space<vmem>>, vector<1x1x256xf32>
    %333 = vector.shape_cast %332 : vector<1x1x256xf32> to vector<1x256xf32>
    %334 = vector.broadcast %331 : f32 to vector<1x256xf32>
    %335 = arith.mulf %334, %333 : vector<1x256xf32>
    %336 = arith.addf %330, %335 : vector<1x256xf32>
    %c31 = arith.constant 31 : index
    %337 = memref.load %arg2[%c31] : memref<98xf32, #tpu.memory_space<smem>>
    %c0_150 = arith.constant 0 : index
    %c0_151 = arith.constant 0 : index
    %c144 = arith.constant 144 : index
    %338 = vector.load %arg5[%c0_150, %c0_151, %c144] : memref<2x1x512xf32, #tpu.memory_space<vmem>>, vector<1x1x256xf32>
    %339 = vector.shape_cast %338 : vector<1x1x256xf32> to vector<1x256xf32>
    %340 = vector.broadcast %337 : f32 to vector<1x256xf32>
    %341 = arith.mulf %340, %339 : vector<1x256xf32>
    %342 = arith.addf %336, %341 : vector<1x256xf32>
    %c38 = arith.constant 38 : index
    %343 = memref.load %arg2[%c38] : memref<98xf32, #tpu.memory_space<smem>>
    %c0_152 = arith.constant 0 : index
    %c0_153 = arith.constant 0 : index
    %c160 = arith.constant 160 : index
    %344 = vector.load %arg5[%c0_152, %c0_153, %c160] : memref<2x1x512xf32, #tpu.memory_space<vmem>>, vector<1x1x256xf32>
    %345 = vector.shape_cast %344 : vector<1x1x256xf32> to vector<1x256xf32>
    %346 = vector.broadcast %343 : f32 to vector<1x256xf32>
    %347 = arith.mulf %346, %345 : vector<1x256xf32>
    %348 = arith.addf %342, %347 : vector<1x256xf32>
    %c45 = arith.constant 45 : index
    %349 = memref.load %arg2[%c45] : memref<98xf32, #tpu.memory_space<smem>>
    %c0_154 = arith.constant 0 : index
    %c0_155 = arith.constant 0 : index
    %c176 = arith.constant 176 : index
    %350 = vector.load %arg5[%c0_154, %c0_155, %c176] : memref<2x1x512xf32, #tpu.memory_space<vmem>>, vector<1x1x256xf32>
    %351 = vector.shape_cast %350 : vector<1x1x256xf32> to vector<1x256xf32>
    %352 = vector.broadcast %349 : f32 to vector<1x256xf32>
    %353 = arith.mulf %352, %351 : vector<1x256xf32>
    %354 = arith.addf %348, %353 : vector<1x256xf32>
    %c52 = arith.constant 52 : index
    %355 = memref.load %arg2[%c52] : memref<98xf32, #tpu.memory_space<smem>>
    %c1_156 = arith.constant 1 : index
    %c0_157 = arith.constant 0 : index
    %c80_158 = arith.constant 80 : index
    %356 = vector.load %arg5[%c1_156, %c0_157, %c80_158] : memref<2x1x512xf32, #tpu.memory_space<vmem>>, vector<1x1x256xf32>
    %357 = vector.shape_cast %356 : vector<1x1x256xf32> to vector<1x256xf32>
    %358 = vector.broadcast %355 : f32 to vector<1x256xf32>
    %359 = arith.mulf %358, %357 : vector<1x256xf32>
    %360 = arith.addf %354, %359 : vector<1x256xf32>
    %c59 = arith.constant 59 : index
    %361 = memref.load %arg2[%c59] : memref<98xf32, #tpu.memory_space<smem>>
    %c1_159 = arith.constant 1 : index
    %c0_160 = arith.constant 0 : index
    %c96_161 = arith.constant 96 : index
    %362 = vector.load %arg5[%c1_159, %c0_160, %c96_161] : memref<2x1x512xf32, #tpu.memory_space<vmem>>, vector<1x1x256xf32>
    %363 = vector.shape_cast %362 : vector<1x1x256xf32> to vector<1x256xf32>
    %364 = vector.broadcast %361 : f32 to vector<1x256xf32>
    %365 = arith.mulf %364, %363 : vector<1x256xf32>
    %366 = arith.addf %360, %365 : vector<1x256xf32>
    %c66 = arith.constant 66 : index
    %367 = memref.load %arg2[%c66] : memref<98xf32, #tpu.memory_space<smem>>
    %c1_162 = arith.constant 1 : index
    %c0_163 = arith.constant 0 : index
    %c112_164 = arith.constant 112 : index
    %368 = vector.load %arg5[%c1_162, %c0_163, %c112_164] : memref<2x1x512xf32, #tpu.memory_space<vmem>>, vector<1x1x256xf32>
    %369 = vector.shape_cast %368 : vector<1x1x256xf32> to vector<1x256xf32>
    %370 = vector.broadcast %367 : f32 to vector<1x256xf32>
    %371 = arith.mulf %370, %369 : vector<1x256xf32>
    %372 = arith.addf %366, %371 : vector<1x256xf32>
    %c73 = arith.constant 73 : index
    %373 = memref.load %arg2[%c73] : memref<98xf32, #tpu.memory_space<smem>>
    %c1_165 = arith.constant 1 : index
    %c0_166 = arith.constant 0 : index
    %c128_167 = arith.constant 128 : index
    %374 = vector.load %arg5[%c1_165, %c0_166, %c128_167] : memref<2x1x512xf32, #tpu.memory_space<vmem>>, vector<1x1x256xf32>
    %375 = vector.shape_cast %374 : vector<1x1x256xf32> to vector<1x256xf32>
    %376 = vector.broadcast %373 : f32 to vector<1x256xf32>
    %377 = arith.mulf %376, %375 : vector<1x256xf32>
    %378 = arith.addf %372, %377 : vector<1x256xf32>
    %c80_168 = arith.constant 80 : index
    %379 = memref.load %arg2[%c80_168] : memref<98xf32, #tpu.memory_space<smem>>
    %c1_169 = arith.constant 1 : index
    %c0_170 = arith.constant 0 : index
    %c144_171 = arith.constant 144 : index
    %380 = vector.load %arg5[%c1_169, %c0_170, %c144_171] : memref<2x1x512xf32, #tpu.memory_space<vmem>>, vector<1x1x256xf32>
    %381 = vector.shape_cast %380 : vector<1x1x256xf32> to vector<1x256xf32>
    %382 = vector.broadcast %379 : f32 to vector<1x256xf32>
    %383 = arith.mulf %382, %381 : vector<1x256xf32>
    %384 = arith.addf %378, %383 : vector<1x256xf32>
    %c87 = arith.constant 87 : index
    %385 = memref.load %arg2[%c87] : memref<98xf32, #tpu.memory_space<smem>>
    %c1_172 = arith.constant 1 : index
    %c0_173 = arith.constant 0 : index
    %c160_174 = arith.constant 160 : index
    %386 = vector.load %arg5[%c1_172, %c0_173, %c160_174] : memref<2x1x512xf32, #tpu.memory_space<vmem>>, vector<1x1x256xf32>
    %387 = vector.shape_cast %386 : vector<1x1x256xf32> to vector<1x256xf32>
    %388 = vector.broadcast %385 : f32 to vector<1x256xf32>
    %389 = arith.mulf %388, %387 : vector<1x256xf32>
    %390 = arith.addf %384, %389 : vector<1x256xf32>
    %c94_175 = arith.constant 94 : index
    %391 = memref.load %arg2[%c94_175] : memref<98xf32, #tpu.memory_space<smem>>
    %c1_176 = arith.constant 1 : index
    %c0_177 = arith.constant 0 : index
    %c176_178 = arith.constant 176 : index
    %392 = vector.load %arg5[%c1_176, %c0_177, %c176_178] : memref<2x1x512xf32, #tpu.memory_space<vmem>>, vector<1x1x256xf32>
    %393 = vector.shape_cast %392 : vector<1x1x256xf32> to vector<1x256xf32>
    %394 = vector.broadcast %391 : f32 to vector<1x256xf32>
    %395 = arith.mulf %394, %393 : vector<1x256xf32>
    %396 = arith.addf %390, %395 : vector<1x256xf32>
    %c4 = arith.constant 4 : index
    %397 = memref.load %arg2[%c4] : memref<98xf32, #tpu.memory_space<smem>>
    %c0_179 = arith.constant 0 : index
    %c0_180 = arith.constant 0 : index
    %c81 = arith.constant 81 : index
    %398 = vector.load %arg5[%c0_179, %c0_180, %c81] : memref<2x1x512xf32, #tpu.memory_space<vmem>>, vector<1x1x256xf32>
    %399 = vector.shape_cast %398 : vector<1x1x256xf32> to vector<1x256xf32>
    %400 = vector.broadcast %397 : f32 to vector<1x256xf32>
    %401 = arith.mulf %400, %399 : vector<1x256xf32>
    %c11 = arith.constant 11 : index
    %402 = memref.load %arg2[%c11] : memref<98xf32, #tpu.memory_space<smem>>
    %c0_181 = arith.constant 0 : index
    %c0_182 = arith.constant 0 : index
    %c97 = arith.constant 97 : index
    %403 = vector.load %arg5[%c0_181, %c0_182, %c97] : memref<2x1x512xf32, #tpu.memory_space<vmem>>, vector<1x1x256xf32>
    %404 = vector.shape_cast %403 : vector<1x1x256xf32> to vector<1x256xf32>
    %405 = vector.broadcast %402 : f32 to vector<1x256xf32>
    %406 = arith.mulf %405, %404 : vector<1x256xf32>
    %407 = arith.addf %401, %406 : vector<1x256xf32>
    %c18 = arith.constant 18 : index
    %408 = memref.load %arg2[%c18] : memref<98xf32, #tpu.memory_space<smem>>
    %c0_183 = arith.constant 0 : index
    %c0_184 = arith.constant 0 : index
    %c113 = arith.constant 113 : index
    %409 = vector.load %arg5[%c0_183, %c0_184, %c113] : memref<2x1x512xf32, #tpu.memory_space<vmem>>, vector<1x1x256xf32>
    %410 = vector.shape_cast %409 : vector<1x1x256xf32> to vector<1x256xf32>
    %411 = vector.broadcast %408 : f32 to vector<1x256xf32>
    %412 = arith.mulf %411, %410 : vector<1x256xf32>
    %413 = arith.addf %407, %412 : vector<1x256xf32>
    %c25 = arith.constant 25 : index
    %414 = memref.load %arg2[%c25] : memref<98xf32, #tpu.memory_space<smem>>
    %c0_185 = arith.constant 0 : index
    %c0_186 = arith.constant 0 : index
    %c129 = arith.constant 129 : index
    %415 = vector.load %arg5[%c0_185, %c0_186, %c129] : memref<2x1x512xf32, #tpu.memory_space<vmem>>, vector<1x1x256xf32>
    %416 = vector.shape_cast %415 : vector<1x1x256xf32> to vector<1x256xf32>
    %417 = vector.broadcast %414 : f32 to vector<1x256xf32>
    %418 = arith.mulf %417, %416 : vector<1x256xf32>
    %419 = arith.addf %413, %418 : vector<1x256xf32>
    %c32 = arith.constant 32 : index
    %420 = memref.load %arg2[%c32] : memref<98xf32, #tpu.memory_space<smem>>
    %c0_187 = arith.constant 0 : index
    %c0_188 = arith.constant 0 : index
    %c145 = arith.constant 145 : index
    %421 = vector.load %arg5[%c0_187, %c0_188, %c145] : memref<2x1x512xf32, #tpu.memory_space<vmem>>, vector<1x1x256xf32>
    %422 = vector.shape_cast %421 : vector<1x1x256xf32> to vector<1x256xf32>
    %423 = vector.broadcast %420 : f32 to vector<1x256xf32>
    %424 = arith.mulf %423, %422 : vector<1x256xf32>
    %425 = arith.addf %419, %424 : vector<1x256xf32>
    %c39 = arith.constant 39 : index
    %426 = memref.load %arg2[%c39] : memref<98xf32, #tpu.memory_space<smem>>
    %c0_189 = arith.constant 0 : index
    %c0_190 = arith.constant 0 : index
    %c161 = arith.constant 161 : index
    %427 = vector.load %arg5[%c0_189, %c0_190, %c161] : memref<2x1x512xf32, #tpu.memory_space<vmem>>, vector<1x1x256xf32>
    %428 = vector.shape_cast %427 : vector<1x1x256xf32> to vector<1x256xf32>
    %429 = vector.broadcast %426 : f32 to vector<1x256xf32>
    %430 = arith.mulf %429, %428 : vector<1x256xf32>
    %431 = arith.addf %425, %430 : vector<1x256xf32>
    %c46 = arith.constant 46 : index
    %432 = memref.load %arg2[%c46] : memref<98xf32, #tpu.memory_space<smem>>
    %c0_191 = arith.constant 0 : index
    %c0_192 = arith.constant 0 : index
    %c177 = arith.constant 177 : index
    %433 = vector.load %arg5[%c0_191, %c0_192, %c177] : memref<2x1x512xf32, #tpu.memory_space<vmem>>, vector<1x1x256xf32>
    %434 = vector.shape_cast %433 : vector<1x1x256xf32> to vector<1x256xf32>
    %435 = vector.broadcast %432 : f32 to vector<1x256xf32>
    %436 = arith.mulf %435, %434 : vector<1x256xf32>
    %437 = arith.addf %431, %436 : vector<1x256xf32>
    %c53 = arith.constant 53 : index
    %438 = memref.load %arg2[%c53] : memref<98xf32, #tpu.memory_space<smem>>
    %c1_193 = arith.constant 1 : index
    %c0_194 = arith.constant 0 : index
    %c81_195 = arith.constant 81 : index
    %439 = vector.load %arg5[%c1_193, %c0_194, %c81_195] : memref<2x1x512xf32, #tpu.memory_space<vmem>>, vector<1x1x256xf32>
    %440 = vector.shape_cast %439 : vector<1x1x256xf32> to vector<1x256xf32>
    %441 = vector.broadcast %438 : f32 to vector<1x256xf32>
    %442 = arith.mulf %441, %440 : vector<1x256xf32>
    %443 = arith.addf %437, %442 : vector<1x256xf32>
    %c60 = arith.constant 60 : index
    %444 = memref.load %arg2[%c60] : memref<98xf32, #tpu.memory_space<smem>>
    %c1_196 = arith.constant 1 : index
    %c0_197 = arith.constant 0 : index
    %c97_198 = arith.constant 97 : index
    %445 = vector.load %arg5[%c1_196, %c0_197, %c97_198] : memref<2x1x512xf32, #tpu.memory_space<vmem>>, vector<1x1x256xf32>
    %446 = vector.shape_cast %445 : vector<1x1x256xf32> to vector<1x256xf32>
    %447 = vector.broadcast %444 : f32 to vector<1x256xf32>
    %448 = arith.mulf %447, %446 : vector<1x256xf32>
    %449 = arith.addf %443, %448 : vector<1x256xf32>
    %c67 = arith.constant 67 : index
    %450 = memref.load %arg2[%c67] : memref<98xf32, #tpu.memory_space<smem>>
    %c1_199 = arith.constant 1 : index
    %c0_200 = arith.constant 0 : index
    %c113_201 = arith.constant 113 : index
    %451 = vector.load %arg5[%c1_199, %c0_200, %c113_201] : memref<2x1x512xf32, #tpu.memory_space<vmem>>, vector<1x1x256xf32>
    %452 = vector.shape_cast %451 : vector<1x1x256xf32> to vector<1x256xf32>
    %453 = vector.broadcast %450 : f32 to vector<1x256xf32>
    %454 = arith.mulf %453, %452 : vector<1x256xf32>
    %455 = arith.addf %449, %454 : vector<1x256xf32>
    %c74 = arith.constant 74 : index
    %456 = memref.load %arg2[%c74] : memref<98xf32, #tpu.memory_space<smem>>
    %c1_202 = arith.constant 1 : index
    %c0_203 = arith.constant 0 : index
    %c129_204 = arith.constant 129 : index
    %457 = vector.load %arg5[%c1_202, %c0_203, %c129_204] : memref<2x1x512xf32, #tpu.memory_space<vmem>>, vector<1x1x256xf32>
    %458 = vector.shape_cast %457 : vector<1x1x256xf32> to vector<1x256xf32>
    %459 = vector.broadcast %456 : f32 to vector<1x256xf32>
    %460 = arith.mulf %459, %458 : vector<1x256xf32>
    %461 = arith.addf %455, %460 : vector<1x256xf32>
    %c81_205 = arith.constant 81 : index
    %462 = memref.load %arg2[%c81_205] : memref<98xf32, #tpu.memory_space<smem>>
    %c1_206 = arith.constant 1 : index
    %c0_207 = arith.constant 0 : index
    %c145_208 = arith.constant 145 : index
    %463 = vector.load %arg5[%c1_206, %c0_207, %c145_208] : memref<2x1x512xf32, #tpu.memory_space<vmem>>, vector<1x1x256xf32>
    %464 = vector.shape_cast %463 : vector<1x1x256xf32> to vector<1x256xf32>
    %465 = vector.broadcast %462 : f32 to vector<1x256xf32>
    %466 = arith.mulf %465, %464 : vector<1x256xf32>
    %467 = arith.addf %461, %466 : vector<1x256xf32>
    %c88 = arith.constant 88 : index
    %468 = memref.load %arg2[%c88] : memref<98xf32, #tpu.memory_space<smem>>
    %c1_209 = arith.constant 1 : index
    %c0_210 = arith.constant 0 : index
    %c161_211 = arith.constant 161 : index
    %469 = vector.load %arg5[%c1_209, %c0_210, %c161_211] : memref<2x1x512xf32, #tpu.memory_space<vmem>>, vector<1x1x256xf32>
    %470 = vector.shape_cast %469 : vector<1x1x256xf32> to vector<1x256xf32>
    %471 = vector.broadcast %468 : f32 to vector<1x256xf32>
    %472 = arith.mulf %471, %470 : vector<1x256xf32>
    %473 = arith.addf %467, %472 : vector<1x256xf32>
    %c95_212 = arith.constant 95 : index
    %474 = memref.load %arg2[%c95_212] : memref<98xf32, #tpu.memory_space<smem>>
    %c1_213 = arith.constant 1 : index
    %c0_214 = arith.constant 0 : index
    %c177_215 = arith.constant 177 : index
    %475 = vector.load %arg5[%c1_213, %c0_214, %c177_215] : memref<2x1x512xf32, #tpu.memory_space<vmem>>, vector<1x1x256xf32>
    %476 = vector.shape_cast %475 : vector<1x1x256xf32> to vector<1x256xf32>
    %477 = vector.broadcast %474 : f32 to vector<1x256xf32>
    %478 = arith.mulf %477, %476 : vector<1x256xf32>
    %479 = arith.addf %473, %478 : vector<1x256xf32>
    %c1_i32_216 = arith.constant 1 : i32
    %480 = vector.broadcast %c1_i32_216 : i32 to vector<1x256xi32>
    %481 = arith.addi %31, %480 : vector<1x256xi32>
    %c0_i32_217 = arith.constant 0 : i32
    %482 = vector.broadcast %c0_i32_217 : i32 to vector<1x256xi32>
    %483 = arith.cmpi sge, %481, %482 : vector<1x256xi32>
    %c1_i32_218 = arith.constant 1 : i32
    %484 = vector.broadcast %c1_i32_218 : i32 to vector<1x256xi32>
    %485 = arith.addi %31, %484 : vector<1x256xi32>
    %c16_i32_219 = arith.constant 16 : i32
    %486 = vector.broadcast %c16_i32_219 : i32 to vector<1x256xi32>
    %487 = arith.cmpi slt, %485, %486 : vector<1x256xi32>
    %488 = arith.andi %483, %487 : vector<1x256xi1>
    %cst_220 = arith.constant 0.000000e+00 : f32
    %489 = vector.broadcast %cst_220 : f32 to vector<1x256xf32>
    %490 = arith.select %488, %479, %489 : vector<1x256xi1>, vector<1x256xf32>
    %c5 = arith.constant 5 : index
    %491 = memref.load %arg2[%c5] : memref<98xf32, #tpu.memory_space<smem>>
    %c0_221 = arith.constant 0 : index
    %c0_222 = arith.constant 0 : index
    %c82 = arith.constant 82 : index
    %492 = vector.load %arg5[%c0_221, %c0_222, %c82] : memref<2x1x512xf32, #tpu.memory_space<vmem>>, vector<1x1x256xf32>
    %493 = vector.shape_cast %492 : vector<1x1x256xf32> to vector<1x256xf32>
    %494 = vector.broadcast %491 : f32 to vector<1x256xf32>
    %495 = arith.mulf %494, %493 : vector<1x256xf32>
    %c12 = arith.constant 12 : index
    %496 = memref.load %arg2[%c12] : memref<98xf32, #tpu.memory_space<smem>>
    %c0_223 = arith.constant 0 : index
    %c0_224 = arith.constant 0 : index
    %c98 = arith.constant 98 : index
    %497 = vector.load %arg5[%c0_223, %c0_224, %c98] : memref<2x1x512xf32, #tpu.memory_space<vmem>>, vector<1x1x256xf32>
    %498 = vector.shape_cast %497 : vector<1x1x256xf32> to vector<1x256xf32>
    %499 = vector.broadcast %496 : f32 to vector<1x256xf32>
    %500 = arith.mulf %499, %498 : vector<1x256xf32>
    %501 = arith.addf %495, %500 : vector<1x256xf32>
    %c19 = arith.constant 19 : index
    %502 = memref.load %arg2[%c19] : memref<98xf32, #tpu.memory_space<smem>>
    %c0_225 = arith.constant 0 : index
    %c0_226 = arith.constant 0 : index
    %c114 = arith.constant 114 : index
    %503 = vector.load %arg5[%c0_225, %c0_226, %c114] : memref<2x1x512xf32, #tpu.memory_space<vmem>>, vector<1x1x256xf32>
    %504 = vector.shape_cast %503 : vector<1x1x256xf32> to vector<1x256xf32>
    %505 = vector.broadcast %502 : f32 to vector<1x256xf32>
    %506 = arith.mulf %505, %504 : vector<1x256xf32>
    %507 = arith.addf %501, %506 : vector<1x256xf32>
    %c26 = arith.constant 26 : index
    %508 = memref.load %arg2[%c26] : memref<98xf32, #tpu.memory_space<smem>>
    %c0_227 = arith.constant 0 : index
    %c0_228 = arith.constant 0 : index
    %c130 = arith.constant 130 : index
    %509 = vector.load %arg5[%c0_227, %c0_228, %c130] : memref<2x1x512xf32, #tpu.memory_space<vmem>>, vector<1x1x256xf32>
    %510 = vector.shape_cast %509 : vector<1x1x256xf32> to vector<1x256xf32>
    %511 = vector.broadcast %508 : f32 to vector<1x256xf32>
    %512 = arith.mulf %511, %510 : vector<1x256xf32>
    %513 = arith.addf %507, %512 : vector<1x256xf32>
    %c33 = arith.constant 33 : index
    %514 = memref.load %arg2[%c33] : memref<98xf32, #tpu.memory_space<smem>>
    %c0_229 = arith.constant 0 : index
    %c0_230 = arith.constant 0 : index
    %c146 = arith.constant 146 : index
    %515 = vector.load %arg5[%c0_229, %c0_230, %c146] : memref<2x1x512xf32, #tpu.memory_space<vmem>>, vector<1x1x256xf32>
    %516 = vector.shape_cast %515 : vector<1x1x256xf32> to vector<1x256xf32>
    %517 = vector.broadcast %514 : f32 to vector<1x256xf32>
    %518 = arith.mulf %517, %516 : vector<1x256xf32>
    %519 = arith.addf %513, %518 : vector<1x256xf32>
    %c40 = arith.constant 40 : index
    %520 = memref.load %arg2[%c40] : memref<98xf32, #tpu.memory_space<smem>>
    %c0_231 = arith.constant 0 : index
    %c0_232 = arith.constant 0 : index
    %c162 = arith.constant 162 : index
    %521 = vector.load %arg5[%c0_231, %c0_232, %c162] : memref<2x1x512xf32, #tpu.memory_space<vmem>>, vector<1x1x256xf32>
    %522 = vector.shape_cast %521 : vector<1x1x256xf32> to vector<1x256xf32>
    %523 = vector.broadcast %520 : f32 to vector<1x256xf32>
    %524 = arith.mulf %523, %522 : vector<1x256xf32>
    %525 = arith.addf %519, %524 : vector<1x256xf32>
    %c47 = arith.constant 47 : index
    %526 = memref.load %arg2[%c47] : memref<98xf32, #tpu.memory_space<smem>>
    %c0_233 = arith.constant 0 : index
    %c0_234 = arith.constant 0 : index
    %c178 = arith.constant 178 : index
    %527 = vector.load %arg5[%c0_233, %c0_234, %c178] : memref<2x1x512xf32, #tpu.memory_space<vmem>>, vector<1x1x256xf32>
    %528 = vector.shape_cast %527 : vector<1x1x256xf32> to vector<1x256xf32>
    %529 = vector.broadcast %526 : f32 to vector<1x256xf32>
    %530 = arith.mulf %529, %528 : vector<1x256xf32>
    %531 = arith.addf %525, %530 : vector<1x256xf32>
    %c54 = arith.constant 54 : index
    %532 = memref.load %arg2[%c54] : memref<98xf32, #tpu.memory_space<smem>>
    %c1_235 = arith.constant 1 : index
    %c0_236 = arith.constant 0 : index
    %c82_237 = arith.constant 82 : index
    %533 = vector.load %arg5[%c1_235, %c0_236, %c82_237] : memref<2x1x512xf32, #tpu.memory_space<vmem>>, vector<1x1x256xf32>
    %534 = vector.shape_cast %533 : vector<1x1x256xf32> to vector<1x256xf32>
    %535 = vector.broadcast %532 : f32 to vector<1x256xf32>
    %536 = arith.mulf %535, %534 : vector<1x256xf32>
    %537 = arith.addf %531, %536 : vector<1x256xf32>
    %c61 = arith.constant 61 : index
    %538 = memref.load %arg2[%c61] : memref<98xf32, #tpu.memory_space<smem>>
    %c1_238 = arith.constant 1 : index
    %c0_239 = arith.constant 0 : index
    %c98_240 = arith.constant 98 : index
    %539 = vector.load %arg5[%c1_238, %c0_239, %c98_240] : memref<2x1x512xf32, #tpu.memory_space<vmem>>, vector<1x1x256xf32>
    %540 = vector.shape_cast %539 : vector<1x1x256xf32> to vector<1x256xf32>
    %541 = vector.broadcast %538 : f32 to vector<1x256xf32>
    %542 = arith.mulf %541, %540 : vector<1x256xf32>
    %543 = arith.addf %537, %542 : vector<1x256xf32>
    %c68 = arith.constant 68 : index
    %544 = memref.load %arg2[%c68] : memref<98xf32, #tpu.memory_space<smem>>
    %c1_241 = arith.constant 1 : index
    %c0_242 = arith.constant 0 : index
    %c114_243 = arith.constant 114 : index
    %545 = vector.load %arg5[%c1_241, %c0_242, %c114_243] : memref<2x1x512xf32, #tpu.memory_space<vmem>>, vector<1x1x256xf32>
    %546 = vector.shape_cast %545 : vector<1x1x256xf32> to vector<1x256xf32>
    %547 = vector.broadcast %544 : f32 to vector<1x256xf32>
    %548 = arith.mulf %547, %546 : vector<1x256xf32>
    %549 = arith.addf %543, %548 : vector<1x256xf32>
    %c75 = arith.constant 75 : index
    %550 = memref.load %arg2[%c75] : memref<98xf32, #tpu.memory_space<smem>>
    %c1_244 = arith.constant 1 : index
    %c0_245 = arith.constant 0 : index
    %c130_246 = arith.constant 130 : index
    %551 = vector.load %arg5[%c1_244, %c0_245, %c130_246] : memref<2x1x512xf32, #tpu.memory_space<vmem>>, vector<1x1x256xf32>
    %552 = vector.shape_cast %551 : vector<1x1x256xf32> to vector<1x256xf32>
    %553 = vector.broadcast %550 : f32 to vector<1x256xf32>
    %554 = arith.mulf %553, %552 : vector<1x256xf32>
    %555 = arith.addf %549, %554 : vector<1x256xf32>
    %c82_247 = arith.constant 82 : index
    %556 = memref.load %arg2[%c82_247] : memref<98xf32, #tpu.memory_space<smem>>
    %c1_248 = arith.constant 1 : index
    %c0_249 = arith.constant 0 : index
    %c146_250 = arith.constant 146 : index
    %557 = vector.load %arg5[%c1_248, %c0_249, %c146_250] : memref<2x1x512xf32, #tpu.memory_space<vmem>>, vector<1x1x256xf32>
    %558 = vector.shape_cast %557 : vector<1x1x256xf32> to vector<1x256xf32>
    %559 = vector.broadcast %556 : f32 to vector<1x256xf32>
    %560 = arith.mulf %559, %558 : vector<1x256xf32>
    %561 = arith.addf %555, %560 : vector<1x256xf32>
    %c89 = arith.constant 89 : index
    %562 = memref.load %arg2[%c89] : memref<98xf32, #tpu.memory_space<smem>>
    %c1_251 = arith.constant 1 : index
    %c0_252 = arith.constant 0 : index
    %c162_253 = arith.constant 162 : index
    %563 = vector.load %arg5[%c1_251, %c0_252, %c162_253] : memref<2x1x512xf32, #tpu.memory_space<vmem>>, vector<1x1x256xf32>
    %564 = vector.shape_cast %563 : vector<1x1x256xf32> to vector<1x256xf32>
    %565 = vector.broadcast %562 : f32 to vector<1x256xf32>
    %566 = arith.mulf %565, %564 : vector<1x256xf32>
    %567 = arith.addf %561, %566 : vector<1x256xf32>
    %c96_254 = arith.constant 96 : index
    %568 = memref.load %arg2[%c96_254] : memref<98xf32, #tpu.memory_space<smem>>
    %c1_255 = arith.constant 1 : index
    %c0_256 = arith.constant 0 : index
    %c178_257 = arith.constant 178 : index
    %569 = vector.load %arg5[%c1_255, %c0_256, %c178_257] : memref<2x1x512xf32, #tpu.memory_space<vmem>>, vector<1x1x256xf32>
    %570 = vector.shape_cast %569 : vector<1x1x256xf32> to vector<1x256xf32>
    %571 = vector.broadcast %568 : f32 to vector<1x256xf32>
    %572 = arith.mulf %571, %570 : vector<1x256xf32>
    %573 = arith.addf %567, %572 : vector<1x256xf32>
    %c2_i32 = arith.constant 2 : i32
    %574 = vector.broadcast %c2_i32 : i32 to vector<1x256xi32>
    %575 = arith.addi %31, %574 : vector<1x256xi32>
    %c0_i32_258 = arith.constant 0 : i32
    %576 = vector.broadcast %c0_i32_258 : i32 to vector<1x256xi32>
    %577 = arith.cmpi sge, %575, %576 : vector<1x256xi32>
    %c2_i32_259 = arith.constant 2 : i32
    %578 = vector.broadcast %c2_i32_259 : i32 to vector<1x256xi32>
    %579 = arith.addi %31, %578 : vector<1x256xi32>
    %c16_i32_260 = arith.constant 16 : i32
    %580 = vector.broadcast %c16_i32_260 : i32 to vector<1x256xi32>
    %581 = arith.cmpi slt, %579, %580 : vector<1x256xi32>
    %582 = arith.andi %577, %581 : vector<1x256xi1>
    %cst_261 = arith.constant 0.000000e+00 : f32
    %583 = vector.broadcast %cst_261 : f32 to vector<1x256xf32>
    %584 = arith.select %582, %573, %583 : vector<1x256xi1>, vector<1x256xf32>
    %c6 = arith.constant 6 : index
    %585 = memref.load %arg2[%c6] : memref<98xf32, #tpu.memory_space<smem>>
    %c0_262 = arith.constant 0 : index
    %c0_263 = arith.constant 0 : index
    %c83 = arith.constant 83 : index
    %586 = vector.load %arg5[%c0_262, %c0_263, %c83] : memref<2x1x512xf32, #tpu.memory_space<vmem>>, vector<1x1x256xf32>
    %587 = vector.shape_cast %586 : vector<1x1x256xf32> to vector<1x256xf32>
    %588 = vector.broadcast %585 : f32 to vector<1x256xf32>
    %589 = arith.mulf %588, %587 : vector<1x256xf32>
    %c13 = arith.constant 13 : index
    %590 = memref.load %arg2[%c13] : memref<98xf32, #tpu.memory_space<smem>>
    %c0_264 = arith.constant 0 : index
    %c0_265 = arith.constant 0 : index
    %c99 = arith.constant 99 : index
    %591 = vector.load %arg5[%c0_264, %c0_265, %c99] : memref<2x1x512xf32, #tpu.memory_space<vmem>>, vector<1x1x256xf32>
    %592 = vector.shape_cast %591 : vector<1x1x256xf32> to vector<1x256xf32>
    %593 = vector.broadcast %590 : f32 to vector<1x256xf32>
    %594 = arith.mulf %593, %592 : vector<1x256xf32>
    %595 = arith.addf %589, %594 : vector<1x256xf32>
    %c20 = arith.constant 20 : index
    %596 = memref.load %arg2[%c20] : memref<98xf32, #tpu.memory_space<smem>>
    %c0_266 = arith.constant 0 : index
    %c0_267 = arith.constant 0 : index
    %c115 = arith.constant 115 : index
    %597 = vector.load %arg5[%c0_266, %c0_267, %c115] : memref<2x1x512xf32, #tpu.memory_space<vmem>>, vector<1x1x256xf32>
    %598 = vector.shape_cast %597 : vector<1x1x256xf32> to vector<1x256xf32>
    %599 = vector.broadcast %596 : f32 to vector<1x256xf32>
    %600 = arith.mulf %599, %598 : vector<1x256xf32>
    %601 = arith.addf %595, %600 : vector<1x256xf32>
    %c27 = arith.constant 27 : index
    %602 = memref.load %arg2[%c27] : memref<98xf32, #tpu.memory_space<smem>>
    %c0_268 = arith.constant 0 : index
    %c0_269 = arith.constant 0 : index
    %c131 = arith.constant 131 : index
    %603 = vector.load %arg5[%c0_268, %c0_269, %c131] : memref<2x1x512xf32, #tpu.memory_space<vmem>>, vector<1x1x256xf32>
    %604 = vector.shape_cast %603 : vector<1x1x256xf32> to vector<1x256xf32>
    %605 = vector.broadcast %602 : f32 to vector<1x256xf32>
    %606 = arith.mulf %605, %604 : vector<1x256xf32>
    %607 = arith.addf %601, %606 : vector<1x256xf32>
    %c34 = arith.constant 34 : index
    %608 = memref.load %arg2[%c34] : memref<98xf32, #tpu.memory_space<smem>>
    %c0_270 = arith.constant 0 : index
    %c0_271 = arith.constant 0 : index
    %c147 = arith.constant 147 : index
    %609 = vector.load %arg5[%c0_270, %c0_271, %c147] : memref<2x1x512xf32, #tpu.memory_space<vmem>>, vector<1x1x256xf32>
    %610 = vector.shape_cast %609 : vector<1x1x256xf32> to vector<1x256xf32>
    %611 = vector.broadcast %608 : f32 to vector<1x256xf32>
    %612 = arith.mulf %611, %610 : vector<1x256xf32>
    %613 = arith.addf %607, %612 : vector<1x256xf32>
    %c41 = arith.constant 41 : index
    %614 = memref.load %arg2[%c41] : memref<98xf32, #tpu.memory_space<smem>>
    %c0_272 = arith.constant 0 : index
    %c0_273 = arith.constant 0 : index
    %c163 = arith.constant 163 : index
    %615 = vector.load %arg5[%c0_272, %c0_273, %c163] : memref<2x1x512xf32, #tpu.memory_space<vmem>>, vector<1x1x256xf32>
    %616 = vector.shape_cast %615 : vector<1x1x256xf32> to vector<1x256xf32>
    %617 = vector.broadcast %614 : f32 to vector<1x256xf32>
    %618 = arith.mulf %617, %616 : vector<1x256xf32>
    %619 = arith.addf %613, %618 : vector<1x256xf32>
    %c48 = arith.constant 48 : index
    %620 = memref.load %arg2[%c48] : memref<98xf32, #tpu.memory_space<smem>>
    %c0_274 = arith.constant 0 : index
    %c0_275 = arith.constant 0 : index
    %c179 = arith.constant 179 : index
    %621 = vector.load %arg5[%c0_274, %c0_275, %c179] : memref<2x1x512xf32, #tpu.memory_space<vmem>>, vector<1x1x256xf32>
    %622 = vector.shape_cast %621 : vector<1x1x256xf32> to vector<1x256xf32>
    %623 = vector.broadcast %620 : f32 to vector<1x256xf32>
    %624 = arith.mulf %623, %622 : vector<1x256xf32>
    %625 = arith.addf %619, %624 : vector<1x256xf32>
    %c55 = arith.constant 55 : index
    %626 = memref.load %arg2[%c55] : memref<98xf32, #tpu.memory_space<smem>>
    %c1_276 = arith.constant 1 : index
    %c0_277 = arith.constant 0 : index
    %c83_278 = arith.constant 83 : index
    %627 = vector.load %arg5[%c1_276, %c0_277, %c83_278] : memref<2x1x512xf32, #tpu.memory_space<vmem>>, vector<1x1x256xf32>
    %628 = vector.shape_cast %627 : vector<1x1x256xf32> to vector<1x256xf32>
    %629 = vector.broadcast %626 : f32 to vector<1x256xf32>
    %630 = arith.mulf %629, %628 : vector<1x256xf32>
    %631 = arith.addf %625, %630 : vector<1x256xf32>
    %c62 = arith.constant 62 : index
    %632 = memref.load %arg2[%c62] : memref<98xf32, #tpu.memory_space<smem>>
    %c1_279 = arith.constant 1 : index
    %c0_280 = arith.constant 0 : index
    %c99_281 = arith.constant 99 : index
    %633 = vector.load %arg5[%c1_279, %c0_280, %c99_281] : memref<2x1x512xf32, #tpu.memory_space<vmem>>, vector<1x1x256xf32>
    %634 = vector.shape_cast %633 : vector<1x1x256xf32> to vector<1x256xf32>
    %635 = vector.broadcast %632 : f32 to vector<1x256xf32>
    %636 = arith.mulf %635, %634 : vector<1x256xf32>
    %637 = arith.addf %631, %636 : vector<1x256xf32>
    %c69 = arith.constant 69 : index
    %638 = memref.load %arg2[%c69] : memref<98xf32, #tpu.memory_space<smem>>
    %c1_282 = arith.constant 1 : index
    %c0_283 = arith.constant 0 : index
    %c115_284 = arith.constant 115 : index
    %639 = vector.load %arg5[%c1_282, %c0_283, %c115_284] : memref<2x1x512xf32, #tpu.memory_space<vmem>>, vector<1x1x256xf32>
    %640 = vector.shape_cast %639 : vector<1x1x256xf32> to vector<1x256xf32>
    %641 = vector.broadcast %638 : f32 to vector<1x256xf32>
    %642 = arith.mulf %641, %640 : vector<1x256xf32>
    %643 = arith.addf %637, %642 : vector<1x256xf32>
    %c76 = arith.constant 76 : index
    %644 = memref.load %arg2[%c76] : memref<98xf32, #tpu.memory_space<smem>>
    %c1_285 = arith.constant 1 : index
    %c0_286 = arith.constant 0 : index
    %c131_287 = arith.constant 131 : index
    %645 = vector.load %arg5[%c1_285, %c0_286, %c131_287] : memref<2x1x512xf32, #tpu.memory_space<vmem>>, vector<1x1x256xf32>
    %646 = vector.shape_cast %645 : vector<1x1x256xf32> to vector<1x256xf32>
    %647 = vector.broadcast %644 : f32 to vector<1x256xf32>
    %648 = arith.mulf %647, %646 : vector<1x256xf32>
    %649 = arith.addf %643, %648 : vector<1x256xf32>
    %c83_288 = arith.constant 83 : index
    %650 = memref.load %arg2[%c83_288] : memref<98xf32, #tpu.memory_space<smem>>
    %c1_289 = arith.constant 1 : index
    %c0_290 = arith.constant 0 : index
    %c147_291 = arith.constant 147 : index
    %651 = vector.load %arg5[%c1_289, %c0_290, %c147_291] : memref<2x1x512xf32, #tpu.memory_space<vmem>>, vector<1x1x256xf32>
    %652 = vector.shape_cast %651 : vector<1x1x256xf32> to vector<1x256xf32>
    %653 = vector.broadcast %650 : f32 to vector<1x256xf32>
    %654 = arith.mulf %653, %652 : vector<1x256xf32>
    %655 = arith.addf %649, %654 : vector<1x256xf32>
    %c90 = arith.constant 90 : index
    %656 = memref.load %arg2[%c90] : memref<98xf32, #tpu.memory_space<smem>>
    %c1_292 = arith.constant 1 : index
    %c0_293 = arith.constant 0 : index
    %c163_294 = arith.constant 163 : index
    %657 = vector.load %arg5[%c1_292, %c0_293, %c163_294] : memref<2x1x512xf32, #tpu.memory_space<vmem>>, vector<1x1x256xf32>
    %658 = vector.shape_cast %657 : vector<1x1x256xf32> to vector<1x256xf32>
    %659 = vector.broadcast %656 : f32 to vector<1x256xf32>
    %660 = arith.mulf %659, %658 : vector<1x256xf32>
    %661 = arith.addf %655, %660 : vector<1x256xf32>
    %c97_295 = arith.constant 97 : index
    %662 = memref.load %arg2[%c97_295] : memref<98xf32, #tpu.memory_space<smem>>
    %c1_296 = arith.constant 1 : index
    %c0_297 = arith.constant 0 : index
    %c179_298 = arith.constant 179 : index
    %663 = vector.load %arg5[%c1_296, %c0_297, %c179_298] : memref<2x1x512xf32, #tpu.memory_space<vmem>>, vector<1x1x256xf32>
    %664 = vector.shape_cast %663 : vector<1x1x256xf32> to vector<1x256xf32>
    %665 = vector.broadcast %662 : f32 to vector<1x256xf32>
    %666 = arith.mulf %665, %664 : vector<1x256xf32>
    %667 = arith.addf %661, %666 : vector<1x256xf32>
    %c3_i32 = arith.constant 3 : i32
    %668 = vector.broadcast %c3_i32 : i32 to vector<1x256xi32>
    %669 = arith.addi %31, %668 : vector<1x256xi32>
    %c0_i32_299 = arith.constant 0 : i32
    %670 = vector.broadcast %c0_i32_299 : i32 to vector<1x256xi32>
    %671 = arith.cmpi sge, %669, %670 : vector<1x256xi32>
    %c3_i32_300 = arith.constant 3 : i32
    %672 = vector.broadcast %c3_i32_300 : i32 to vector<1x256xi32>
    %673 = arith.addi %31, %672 : vector<1x256xi32>
    %c16_i32_301 = arith.constant 16 : i32
    %674 = vector.broadcast %c16_i32_301 : i32 to vector<1x256xi32>
    %675 = arith.cmpi slt, %673, %674 : vector<1x256xi32>
    %676 = arith.andi %671, %675 : vector<1x256xi1>
    %cst_302 = arith.constant 0.000000e+00 : f32
    %677 = vector.broadcast %cst_302 : f32 to vector<1x256xf32>
    %678 = arith.select %676, %667, %677 : vector<1x256xi1>, vector<1x256xf32>
    %679 = arith.addf %125, %219 : vector<1x256xf32>
    %680 = arith.addf %313, %396 : vector<1x256xf32>
    %681 = arith.addf %490, %584 : vector<1x256xf32>
    %682 = arith.addf %679, %680 : vector<1x256xf32>
    %683 = arith.addf %681, %678 : vector<1x256xf32>
    %684 = arith.addf %682, %683 : vector<1x256xf32>
    %c0_303 = arith.constant 0 : index
    %685 = memref.load %arg3[%c0_303] : memref<1xf32, #tpu.memory_space<smem>>
    %686 = vector.broadcast %685 : f32 to vector<1x256xf32>
    %687 = arith.addf %684, %686 : vector<1x256xf32>
    %cst_304 = arith.constant dense<0.000000e+00> : vector<1xf32>
    %688 = vector.multi_reduction <add>, %687, %cst_304 [1] : vector<1x256xf32> to vector<1xf32>
    %689 = vector.shape_cast %688 : vector<1xf32> to vector<1x1xf32>
    %cst_305 = arith.constant 2.560000e+02 : f32
    %690 = vector.broadcast %cst_305 : f32 to vector<1x1xf32>
    %691 = arith.divf %689, %690 : vector<1x1xf32>
    %692 = vector.broadcast %691 : vector<1x1xf32> to vector<1x256xf32>
    %693 = arith.subf %687, %692 : vector<1x256xf32>
    %694 = arith.mulf %693, %693 : vector<1x256xf32>
    %cst_306 = arith.constant dense<0.000000e+00> : vector<1xf32>
    %695 = vector.multi_reduction <add>, %694, %cst_306 [1] : vector<1x256xf32> to vector<1xf32>
    %696 = vector.shape_cast %695 : vector<1xf32> to vector<1x1xf32>
    %cst_307 = arith.constant 2.560000e+02 : f32
    %697 = vector.broadcast %cst_307 : f32 to vector<1x1xf32>
    %698 = arith.divf %696, %697 : vector<1x1xf32>
    %cst_308 = arith.constant 9.99999974E-6 : f32
    %699 = vector.broadcast %cst_308 : f32 to vector<1x1xf32>
    %700 = arith.addf %698, %699 : vector<1x1xf32>
    %701 = math.rsqrt %700 : vector<1x1xf32>
    %cst_309 = arith.constant 9.99999974E-6 : f32
    %702 = vector.broadcast %cst_309 : f32 to vector<1x1xf32>
    %703 = arith.addf %698, %702 : vector<1x1xf32>
    %704 = arith.divf %698, %703 : vector<1x1xf32>
    %cst_310 = arith.constant 9.99999974E-6 : f32
    %705 = vector.broadcast %cst_310 : f32 to vector<1x1xf32>
    %706 = arith.addf %704, %705 : vector<1x1xf32>
    %707 = math.rsqrt %706 : vector<1x1xf32>
    %708 = arith.mulf %701, %707 : vector<1x1xf32>
    %709 = vector.broadcast %708 : vector<1x1xf32> to vector<1x256xf32>
    %710 = arith.mulf %693, %709 : vector<1x256xf32>
    %711 = arith.negf %710 : vector<1x256xf32>
    %712 = math.exp %711 : vector<1x256xf32>
    %cst_311 = arith.constant 1.000000e+00 : f32
    %713 = vector.broadcast %cst_311 : f32 to vector<1x256xf32>
    %714 = arith.addf %713, %712 : vector<1x256xf32>
    %715 = arith.divf %713, %714 : vector<1x256xf32>
    %c0_312 = arith.constant 0 : index
    %c0_313 = arith.constant 0 : index
    %c0_314 = arith.constant 0 : index
    %716 = vector.load %arg4[%c0_312, %c0_313, %c0_314] : memref<1x1x256xf32, #tpu.memory_space<vmem>>, vector<1x1x256xf32>
    %717 = vector.shape_cast %716 : vector<1x1x256xf32> to vector<1x256xf32>
    %718 = vector.shape_cast %715 : vector<1x256xf32> to vector<1x1x256xf32>
    tpu.vector_store %arg4[%c0_312, %c0_313, %c0_314], %718 {strides = array<i32>} : memref<1x1x256xf32, #tpu.memory_space<vmem>>, vector<1x1x256xf32>,
    return
  }
  func.func @transform_0(%arg0: i32) -> (i32, i32, i32) {
    %c0_i32 = arith.constant 0 : i32
    %c0_i32_0 = arith.constant 0 : i32
    %c0_i32_1 = arith.constant 0 : i32
    return %arg0, %c0_i32, %c0_i32_0 : i32, i32, i32
  }
  func.func @transform_1(%arg0: i32) -> i32 {
    %c0_i32 = arith.constant 0 : i32
    %c0_i32_0 = arith.constant 0 : i32
    return %c0_i32 : i32
  }
  func.func @transform_2(%arg0: i32) -> i32 {
    %c0_i32 = arith.constant 0 : i32
    %c0_i32_0 = arith.constant 0 : i32
    return %c0_i32 : i32
  }
  func.func @transform_3(%arg0: i32) -> (i32, i32, i32) {
    %c0_i32 = arith.constant 0 : i32
    %c0_i32_0 = arith.constant 0 : i32
    %c0_i32_1 = arith.constant 0 : i32
    return %arg0, %c0_i32, %c0_i32_0 : i32, i32, i32
  }
}

</mosaic_0001>

<llo_original>
// kernel: tpu_custom_call.1
$region0: #{tpu_custom_call.1}
  #allocation0 [shape = 'u32[]', space=smem, size = 0x4, offset = 0x4, fixed_abs, tag = 'smem constant byte address 0x4 - core index']
  #allocation1 [shape = 'u32[72,128]{1,0:T(1,128)}', space=vmem, size = 0x9000, scoped, tag = 'internal scratch']
  #allocation2 [shape = 'f32[2,1,512]{2,1,0:T(1,128)}', space=vmem, size = 0x1000, scoped, tag = 'scratch operand']
  #allocation3 [shape = 'f32[1]{0:T(128)S(6)}', space=smem, size = 0x200, scoped, tag = 'scoped memory for tpu_custom_call.1']
  %s0 = inlined_call_operand.hbm [shape: f32[2,4,256], index: 0, kind: input, shape index: {}]
  %s1 = inlined_call_operand.vmem [shape: f32[98], index: 1, kind: input, shape index: {}]
  %s2 = inlined_call_operand.<no memory space> [shape: f32[1], index: 2, kind: input, shape index: {}]
  %s3 = inlined_call_operand.hbm [shape: f32[2,1,256], index: 3, kind: output, shape index: {}]
  %s4 = sld [smem:[#allocation0]]
  $region53: #{tpu_custom_call.1} parent=0
    _
  %s6 = ssub.s32 1, %s4
  %s7 = scalar_select 0, %s6, %s4
  %8 = sst [smem:[#allocation3]] %s2
  $region1: #{tpu_custom_call.1} parent=0
    #allocation4 [shape = 'u8[8192]{0}', space=vmem, size = 0x2000, scoped, tag = 'input window, operand 0']
    #allocation5 [shape = 's32[2]{0}', space=sflag, size = 0x8, scoped, tag = 'scoped memory for tpu_custom_call.1']
    #allocation6 [shape = 's32[2]{0}', space=sflag, size = 0x8, scoped, tag = 'scoped memory for tpu_custom_call.1']
    #allocation7 [shape = 's32[2]{0}', space=sflag, size = 0x8, scoped, tag = 'scoped memory for tpu_custom_call.1']
    #allocation8 [shape = 'u8[512]{0}', space=smem, size = 0x200, scoped, tag = 'input window, operand 1, single buffered']
    #allocation9 [shape = 'u8[2048]{0}', space=vmem, size = 0x800, scoped, tag = 'output window, operand 0']
    %9 = vsyncpa [#allocation5], 0
    %s10 = scalar_lea.sflag [#allocation5], 1
    %11 = vsyncpa %s10, 0
    %12 = vsyncpa [#allocation7], 0
    %13 = vsyncpa [#allocation6], 0
    %s14 = scalar_lea.sflag [#allocation6], 1
    %15 = vsyncpa %s14, 0
    loop: start=0, step=1, limit=4
    $region2: #{tpu_custom_call.1} parent=1 // loop_pre_header
      _
    $region3: #{tpu_custom_call.1} parent=1 // loop_header
      %s17 = sphi 0, %s21
      %p18 = scmp.ge.s32.totalorder %s17, 4
      %s27 = sphi 0, %s29
      %s30 = sphi 0, %s27
      %s31 = sphi 0, %s30
      %s47 = sphi 0, %s31
      %s51 = sphi 0, %s51
      %s53 = sphi 0, %s51
      %s54 = sphi 0, %s53
      %s68 = sphi 0, %s54
      %s72 = sphi 0, %s72
      %s74 = sphi 0, %s72
      %s75 = sphi 0, %s74
      %s89 = sphi 0, %s75
      %s95 = sphi 0, %s97
      %s98 = sphi 0, %s95
      %s99 = sphi 0, %s98
      %s115 = sphi 0, %s99
    $region4: #{tpu_custom_call.1} parent=1 // loop_header_branch
      %20 = sbr.rel (%p18) target = $region8
    $region5: #{tpu_custom_call.1} parent=1 // loop_body
      %s22 = ssub.s32 %s17, 1
      %s23 = ssub.s32 %s17, 2
      %s24 = sadd.s32 %s17, 1
      %s25 = ssub.s32 %s17, %s24
      %p26 = scmp.eq.s32.totalorder %s25, 0
      %s28 = sadd.s32 %s27, 1
      %s29 = scalar_select %p26, %s27, %s28
      %p32 = pneg %p26
      %p33 = scmp.eq.s32.totalorder %s17, 1
      %p34 = por %p32, %p33
      %p35 = scmp.ne.s32.totalorder %s27, %s30
      %p36 = scmp.eq.s32.totalorder %s17, 0
      %p37 = por %p35, %p36
      %p38 = scmp.ne.s32.totalorder %s27, %s30
      %p39 = scmp.eq.s32.totalorder %s22, 1
      %p40 = por %p38, %p39
      %p41 = scmp.ne.s32.totalorder %s30, %s31
      %p42 = scmp.eq.s32.totalorder %s22, 0
      %p43 = por %p41, %p42
      %p44 = scmp.ne.s32.totalorder %s30, %s31
      %p45 = scmp.eq.s32.totalorder %s23, 1
      %p46 = por %p44, %p45
      %p48 = scmp.ne.s32.totalorder %s31, %s47
      %p49 = scmp.eq.s32.totalorder %s23, 0
      %p50 = por %p48, %p49
      %s52 = sadd.s32 %s51, 1
      %p55 = scmp.eq.s32.totalorder %s17, 1
      %p56 = scmp.ne.s32.totalorder %s51, %s53
      %p57 = scmp.eq.s32.totalorder %s17, 0
      %p58 = por %p56, %p57
      %p59 = scmp.ne.s32.totalorder %s51, %s53
      %p60 = scmp.eq.s32.totalorder %s22, 1
      %p61 = por %p59, %p60
      %p62 = scmp.ne.s32.totalorder %s53, %s54
      %p63 = scmp.eq.s32.totalorder %s22, 0
      %p64 = por %p62, %p63
      %p65 = scmp.ne.s32.totalorder %s53, %s54
      %p66 = scmp.eq.s32.totalorder %s23, 1
      %p67 = por %p65, %p66
      %p69 = scmp.ne.s32.totalorder %s54, %s68
      %p70 = scmp.eq.s32.totalorder %s23, 0
      %p71 = por %p69, %p70
      %s73 = sadd.s32 %s72, 1
      %p76 = scmp.eq.s32.totalorder %s17, 1
      %p77 = scmp.ne.s32.totalorder %s72, %s74
      %p78 = scmp.eq.s32.totalorder %s17, 0
      %p79 = por %p77, %p78
      %p80 = scmp.ne.s32.totalorder %s72, %s74
      %p81 = scmp.eq.s32.totalorder %s22, 1
      %p82 = por %p80, %p81
      %p83 = scmp.ne.s32.totalorder %s74, %s75
      %p84 = scmp.eq.s32.totalorder %s22, 0
      %p85 = por %p83, %p84
      %p86 = scmp.ne.s32.totalorder %s74, %s75
      %p87 = scmp.eq.s32.totalorder %s23, 1
      %p88 = por %p86, %p87
      %p90 = scmp.ne.s32.totalorder %s75, %s89
      %p91 = scmp.eq.s32.totalorder %s23, 0
      %p92 = por %p90, %p91
      %s93 = ssub.s32 %s17, %s24
      %p94 = scmp.eq.s32.totalorder %s93, 0
      %s96 = sadd.s32 %s95, 1
      %s97 = scalar_select %p94, %s95, %s96
      %p100 = pneg %p94
      %p101 = scmp.eq.s32.totalorder %s17, 1
      %p102 = por %p100, %p101
      %p103 = scmp.ne.s32.totalorder %s95, %s98
      %p104 = scmp.eq.s32.totalorder %s17, 0
      %p105 = por %p103, %p104
      %p106 = scmp.ne.s32.totalorder %s95, %s98
      %p107 = scmp.eq.s32.totalorder %s22, 1
      %p108 = por %p106, %p107
      %p109 = scmp.ne.s32.totalorder %s98, %s99
      %p110 = scmp.eq.s32.totalorder %s22, 0
      %p111 = por %p109, %p110
      %p112 = scmp.ne.s32.totalorder %s98, %s99
      %p113 = scmp.eq.s32.totalorder %s23, 1
      %p114 = por %p112, %p113
      %p116 = scmp.ne.s32.totalorder %s99, %s115
      %p117 = scmp.eq.s32.totalorder %s23, 0
      %p118 = por %p116, %p117
      %p119 = scmp.le.s32.totalorder 1, %s17
      %p120 = scmp.lt.s32.totalorder %s17, 3
      %p121 = pnand %p119, %p120
      %p122 = pneg %p121
      // Predicated region
      $region9: #{tpu_custom_call.1} parent=5 // pred_check
        _
      $region10: #{tpu_custom_call.1} parent=5 // pred_check_branch
        %124 = sbr.rel (%p121) target = $region12
      $region11: #{tpu_custom_call.1} parent=5 // pred_region
        %s125 = ssub.s32 %s17, 1
        // Predicated region
        $region13: #{tpu_custom_call.1} parent=11 // pred_check
          %p126 = pneg %p64
        $region14: #{tpu_custom_call.1} parent=11 // pred_check_branch
          %128 = sbr.rel (%p126) target = $region16
        $region15: #{tpu_custom_call.1} parent=11 // pred_region
          %130 = vsyncadd [#allocation7], 0
          %s132 = sshll.u32 %s1, 4
          %s133 = int_to_ptr.vmem [resolvable:$true] %s132
          %135 = dma.vmem_to_smem %s133, 16, [#allocation8], [#allocation7]
        $region16: #{tpu_custom_call.1} parent=11 // pred_fallthru
          _
        // Predicated region
        $region17: #{tpu_custom_call.1} parent=11 // pred_check
          %p136 = pneg %p85
        $region18: #{tpu_custom_call.1} parent=11 // pred_check_branch
          %138 = sbr.rel (%p136) target = $region20
        $region19: #{tpu_custom_call.1} parent=11 // pred_region
          _
        $region20: #{tpu_custom_call.1} parent=11 // pred_fallthru
          _
      $region12: #{tpu_custom_call.1} parent=5 // pred_fallthru
        _
      %p139 = scmp.lt.s32.totalorder %s17, 2
      // Predicated region
      $region21: #{tpu_custom_call.1} parent=5 // pred_check
        %p140 = pneg %p139
      $region22: #{tpu_custom_call.1} parent=5 // pred_check_branch
        %142 = sbr.rel (%p140) target = $region24
      $region23: #{tpu_custom_call.1} parent=5 // pred_region
        // Predicated region
        $region25: #{tpu_custom_call.1} parent=23 // pred_check
          %p143 = pneg %p37
        $region26: #{tpu_custom_call.1} parent=23 // pred_check_branch
          %145 = sbr.rel (%p143) target = $region28
        $region27: #{tpu_custom_call.1} parent=23 // pred_region
          %s146 = sand.u32 %s27, 1
          %s147 = scalar_lea.sflag [#allocation5], %s146
          %s148 = sand.u32 %s27, 1
          %s149 = smul.addr %s148, 8
          %s150 = scalar_lea.vmem [#allocation4], %s149
          %152 = vsyncadd %s147, 0
          %s153 = smul.addr %s17, 2
          %s154 = smul.addr %s153, 4
          %s155 = scalar_lea.hbm %s0, %s154
          %s157 = sshll.u32 %s155, 4
          %s158 = int_to_ptr.hbm [resolvable:$true] %s157
          %s159 = sshll.u32 %s150, 4
          %s160 = int_to_ptr.vmem [resolvable:$true] %s159
          %162 = dma.hbm_to_vmem [thread:$0]  %s158, 128, %s160, %s147
        $region28: #{tpu_custom_call.1} parent=23 // pred_fallthru
          _
      $region24: #{tpu_custom_call.1} parent=5 // pred_fallthru
        _
      %p163 = scmp.le.s32.totalorder 1, %s17
      %p164 = scmp.lt.s32.totalorder %s17, 3
      %p165 = pnand %p163, %p164
      %p166 = pneg %p165
      // Predicated region
      $region29: #{tpu_custom_call.1} parent=5 // pred_check
        _
      $region30: #{tpu_custom_call.1} parent=5 // pred_check_branch
        %168 = sbr.rel (%p165) target = $region32
      $region31: #{tpu_custom_call.1} parent=5 // pred_region
        %s169 = ssub.s32 %s17, 1
        %s170 = sand.u32 %s30, 1
        %s171 = scalar_lea.sflag [#allocation5], %s170
        %s172 = sand.u32 %s30, 1
        %s173 = smul.addr %s172, 8
        %s174 = scalar_lea.vmem [#allocation4], %s173
        // Predicated region
        $region33: #{tpu_custom_call.1} parent=31 // pred_check
          %p175 = pneg %p43
        $region34: #{tpu_custom_call.1} parent=31 // pred_check_branch
          %177 = sbr.rel (%p175) target = $region36
        $region35: #{tpu_custom_call.1} parent=31 // pred_region
          %179 = dma.done %s171, 128
        $region36: #{tpu_custom_call.1} parent=31 // pred_fallthru
          _
        // Predicated region
        $region37: #{tpu_custom_call.1} parent=31 // pred_check
          %p180 = pneg %p64
        $region38: #{tpu_custom_call.1} parent=31 // pred_check_branch
          %182 = sbr.rel (%p180) target = $region40
        $region39: #{tpu_custom_call.1} parent=31 // pred_region
          %184 = dma.done [#allocation7], 16
        $region40: #{tpu_custom_call.1} parent=31 // pred_fallthru
          _
        %185 = sfence
        %s186 = sand.u32 %s30, 1
        %s187 = scalar_lea.sflag [#allocation5], %s186
        %s188 = sand.u32 %s30, 1
        %s189 = smul.addr %s188, 8
        %s190 = scalar_lea.vmem [#allocation4], %s189
        %p191 = pneg %p43
        %p192 = pneg %p40
        %p193 = pneg %p64
        %p194 = pneg %p61
        %p195 = pneg %p85
        %p196 = pneg %p82
        %p197 = pneg %p111
        %p198 = pneg %p108
        %s199 = sand.u32 %s98, 1
        %s200 = scalar_lea.sflag [#allocation6], %s199
        %s201 = sand.u32 %s98, 1
        %s202 = smul.addr %s201, 2
        %s203 = scalar_lea.vmem [#allocation9], %s202
        %v204 = vld [vmem:[%s174] sm:$0xff]
        %206 = vst [vmem:[#allocation1] ss:$2 sm:$0xff] %v204
        %v207 = vld.sshfl [vmem:[#allocation1] sm:$0xff pattern:$0x75316420]
        %v208 = vld.sshfl [vmem:[#allocation1 + $0x8] sm:$0xff pattern:$0x75316420]
        %vm211 = vcmask 1043456
        %v212 = vsel %vm211, %v207, 0.0
        %v213 = vrot.slane %v212, 4
        %v214 = vadd.f32 %v212, %v213
        %v215 = vrot.slane %v214, 2
        %v216 = vadd.f32 %v214, %v215
        %v217 = vrot.slane %v216, 1
        %v218 = vadd.f32 %v216, %v217
        %v219 = vsel %vm211, %v208, 0.0
        %v220 = vrot.slane %v219, 4
        %v221 = vadd.f32 %v219, %v220
        %v222 = vrot.slane %v221, 2
        %v223 = vadd.f32 %v221, %v222
        %v224 = vrot.slane %v223, 1
        %v225 = vadd.f32 %v223, %v224
        %v226 = vrcp.pop 4.0
        %v227 = vmul.f32 4.0, %v226
        %v228 = vsub.f32 1.0, %v227
        %v229 = vmul.f32 %v226, %v228
        %v230 = vadd.f32 %v226, %v229
        %vm231 = vweird.f32 %v226
        %v232 = vsel %vm231, %v226, %v230
        %v233 = vmul.f32 %v218, %v232
        %v234 = vmul.f32 %v225, %v232
        %235 = vst [vmem:[#allocation1] ss:$2 sm:$0xff] %v204
        %v236 = vld.sshfl [vmem:[#allocation1] sm:$0xff pattern:$0x75316420]
        %v237 = vld.sshfl [vmem:[#allocation1 + $0x8] sm:$0xff pattern:$0x75316420]
        %v240 = vsel %vm211, %v236, -inf
        %v241 = vrot.slane %v240, 4
        %v242 = vmax.f32 %v240, %v241
        %v243 = vrot.slane %v242, 2
        %v244 = vmax.f32 %v242, %v243
        %v245 = vrot.slane %v244, 1
        %v246 = vmax.f32 %v244, %v245
        %v247 = vsel %vm211, %v237, -inf
        %v248 = vrot.slane %v247, 4
        %v249 = vmax.f32 %v247, %v248
        %v250 = vrot.slane %v249, 2
        %v251 = vmax.f32 %v249, %v250
        %v252 = vrot.slane %v251, 1
        %v253 = vmax.f32 %v251, %v252
        %v254 = vlaneseq
        %vm255 = vcmp.ge.s32.totalorder %v254, 0
        %vm256 = vcmp.lt.s32.totalorder %v254, 128
        %vm257 = vmand %vm255, %vm256
        %258 = vst.msk [vmem:[#allocation2] sm:$0x1] %vm257, 0.0
        %259 = vst.msk [vmem:[#allocation2 + $0x4] sm:$0x1] %vm257, 0.0
        %260 = vst.msk [vmem:[#allocation2 + $0x3] sm:$0x1] %vm257, 0.0
        %261 = vst.msk [vmem:[#allocation2 + $0x7] sm:$0x1] %vm257, 0.0
        %v264 = vrot.slane %v234, 7
        %vm265 = vcmask 1040384
        %v266 = vsel %vm265, %v233, %v264
        %vm268 = vcmp.lt.s32.totalorder %v254, 256
        %vm269 = vmand %vm255, %vm268
        %270 = vst.msk [vmem:[#allocation2 + $0x1] sm:$0x3] %vm269, %v266
        %v273 = vrot.slane %v253, 7
        %v274 = vsel %vm265, %v246, %v273
        %s276 = scalar_lea.vmem [#allocation2], 4
        %277 = vst.msk [vmem:[%s276 + $0x1] sm:$0x3] %vm269, %v274
        %v278 = vlaneseq
        %v279 = vand.u32 %v278, 127
        %v280 = vadd.s32 %v279, 128
        %vm281 = vcmp.lt.s32.totalorder %v279, 0
        %v282 = vsub.s32 0, %v279
        %v283 = vsel %vm281, %v282, %v279
        %v284 = vshrl.u32 %v283, 4
        %v285 = vand.u32 %v283, 15
        %v286 = vsub.s32 0, %v285
        %v287 = vsel %vm281, %v286, %v285
        %vm288 = vcmp.lt.s32.totalorder %v280, 0
        %v289 = vsub.s32 0, %v280
        %v290 = vsel %vm288, %v289, %v280
        %v291 = vshrl.u32 %v290, 4
        %v292 = vand.u32 %v290, 15
        %v293 = vsub.s32 0, %v292
        %v294 = vsel %vm288, %v293, %v292
        %vm295 = vcmp.ne.s32.totalorder %v287, 0
        %vm296 = vcmp.ne.s32.totalorder %v294, 0
        %vm297 = vcmp.lt.s32.totalorder %v287, 0
        %vm298 = vcmp.lt.s32.totalorder %v294, 0
        %vm299 = vmand %vm297, %vm295
        %vm300 = vmand %vm298, %vm296
        %v301 = vadd.s32 %v287, 16
        %v302 = vadd.s32 %v294, 16
        %v303 = vsel %vm299, %v301, %v287
        %v304 = vsel %vm300, %v302, %v294
        %s305 = sld [smem:[#allocation8]]
        %v306 = vld [vmem:[#allocation2] sm:$0x7]
        %v307 = vstv %s305
        %v308 = vmul.f32 %v307, %v306
        %s309 = sld [smem:[#allocation8 + $0x7]]
        %v310 = vstv %s309
        %v311 = vmul.f32 %v310, %v306
        %313 = vrot.lane.b32.xlu0 %v311, 112
        %v314 = vpop.permute.xlu0 %313
        %v315 = vrot.slane %v314, 1
        %vm316 = vcmask 916480
        %v317 = vsel %vm316, %v314, %v315
        %v319 = vadd.f32 %v308, %v317
        %s320 = sld [smem:[#allocation8 + $0xe]]
        %v321 = vstv %s320
        %v322 = vmul.f32 %v321, %v306
        %324 = vrot.lane.b32.xlu0 %v322, 96
        %v325 = vpop.permute.xlu0 %324
        %v326 = vrot.slane %v325, 1
        %vm327 = vcmask 785408
        %v328 = vsel %vm327, %v325, %v326
        %v330 = vadd.f32 %v319, %v328
        %s331 = sld [smem:[#allocation8 + $0x15]]
        %v332 = vstv %s331
        %v333 = vmul.f32 %v332, %v306
        %335 = vrot.lane.b32.xlu0 %v333, 80
        %v336 = vpop.permute.xlu0 %335
        %v337 = vrot.slane %v336, 1
        %vm338 = vcmask 654336
        %v339 = vsel %vm338, %v336, %v337
        %v341 = vadd.f32 %v330, %v339
        %s342 = sld [smem:[#allocation8 + $0x1c]]
        %v343 = vld [vmem:[#allocation2 + $0x1] sm:$0x7]
        %v344 = vstv %s342
        %v345 = vmul.f32 %v344, %v343
        %347 = vrot.lane.b32.xlu0 %v345, 64
        %v348 = vpop.permute.xlu0 %347
        %v349 = vrot.slane %v348, 7
        %vm350 = vcmask 523264
        %v351 = vsel %vm350, %v349, %v348
        %v353 = vadd.f32 %v341, %v351
        %s354 = sld [smem:[#allocation8 + $0x23]]
        %v355 = vstv %s354
        %v356 = vmul.f32 %v355, %v343
        %358 = vrot.lane.b32.xlu0 %v356, 48
        %v359 = vpop.permute.xlu0 %358
        %v360 = vrot.slane %v359, 7
        %vm361 = vcmask 392192
        %v362 = vsel %vm361, %v360, %v359
        %v364 = vadd.f32 %v353, %v362
        %s365 = sld [smem:[#allocation8 + $0x2a]]
        %v366 = vstv %s365
        %v367 = vmul.f32 %v366, %v343
        %369 = vrot.lane.b32.xlu0 %v367, 32
        %v370 = vpop.permute.xlu0 %369
        %v371 = vrot.slane %v370, 7
        %vm372 = vcmask 261120
        %v373 = vsel %vm372, %v371, %v370
        %v375 = vadd.f32 %v364, %v373
        %s376 = sld [smem:[#allocation8 + $0x31]]
        %v377 = vld [vmem:[%s276] sm:$0x7]
        %v378 = vstv %s376
        %v379 = vmul.f32 %v378, %v377
        %v380 = vadd.f32 %v375, %v379
        %s381 = sld [smem:[#allocation8 + $0x38]]
        %v382 = vstv %s381
        %v383 = vmul.f32 %v382, %v377
        %385 = vrot.lane.b32.xlu0 %v383, 112
        %v386 = vpop.permute.xlu0 %385
        %v387 = vrot.slane %v386, 1
        %v388 = vsel %vm316, %v386, %v387
        %v390 = vadd.f32 %v380, %v388
        %s391 = sld [smem:[#allocation8 + $0x3f]]
        %v392 = vstv %s391
        %v393 = vmul.f32 %v392, %v377
        %395 = vrot.lane.b32.xlu0 %v393, 96
        %v396 = vpop.permute.xlu0 %395
        %v397 = vrot.slane %v396, 1
        %v398 = vsel %vm327, %v396, %v397
        %v400 = vadd.f32 %v390, %v398
        %s401 = sld [smem:[#allocation8 + $0x46]]
        %v402 = vstv %s401
        %v403 = vmul.f32 %v402, %v377
        %405 = vrot.lane.b32.xlu0 %v403, 80
        %v406 = vpop.permute.xlu0 %405
        %v407 = vrot.slane %v406, 1
        %v408 = vsel %vm338, %v406, %v407
        %v410 = vadd.f32 %v400, %v408
        %s411 = sld [smem:[#allocation8 + $0x4d]]
        %v412 = vld [vmem:[%s276 + $0x1] sm:$0x7]
        %v413 = vstv %s411
        %v414 = vmul.f32 %v413, %v412
        %416 = vrot.lane.b32.xlu0 %v414, 64
        %v417 = vpop.permute.xlu0 %416
        %v418 = vrot.slane %v417, 7
        %v419 = vsel %vm350, %v418, %v417
        %v421 = vadd.f32 %v410, %v419
        %s422 = sld [smem:[#allocation8 + $0x54]]
        %v423 = vstv %s422
        %v424 = vmul.f32 %v423, %v412
        %426 = vrot.lane.b32.xlu0 %v424, 48
        %v427 = vpop.permute.xlu0 %426
        %v428 = vrot.slane %v427, 7
        %v429 = vsel %vm361, %v428, %v427
        %v431 = vadd.f32 %v421, %v429
        %s432 = sld [smem:[#allocation8 + $0x5b]]
        %v433 = vstv %s432
        %v434 = vmul.f32 %v433, %v412
        %436 = vrot.lane.b32.xlu0 %v434, 32
        %v437 = vpop.permute.xlu0 %436
        %v438 = vrot.slane %v437, 7
        %v439 = vsel %vm372, %v438, %v437
        %v441 = vadd.f32 %v431, %v439
        %v442 = vadd.s32 %v303, 4294967293
        %v443 = vadd.s32 %v304, 4294967293
        %vm444 = vcmp.ge.s32.totalorder %v442, 0
        %vm445 = vcmp.ge.s32.totalorder %v443, 0
        %vm446 = vcmp.lt.s32.totalorder %v442, 16
        %vm447 = vcmp.lt.s32.totalorder %v443, 16
        %vm448 = vmand %vm444, %vm446
        %vm449 = vmand %vm445, %vm447
        %v451 = vperm.slane %v441, 0
        %v452 = vperm.slane %v441, 1
        %v453 = vperm.slane %v441, 2
        %454 = vrot.lane.b32.xlu0 %v451, 51
        %v455 = vpop.permute.xlu0 %454
        %456 = vrot.lane.b32.xlu0 %v452, 51
        %v457 = vpop.permute.xlu0 %456
        %458 = vrot.lane.b32.xlu0 %v453, 51
        %v459 = vpop.permute.xlu0 %458
        %vm460 = vcmask 416768
        %v461 = vsel %vm460, %v455, %v457
        %v462 = vsel %vm460, %v457, %v459
        %v465 = vsel %vm448, %v461, 0.0
        %v466 = vsel %vm449, %v462, 0.0
        %s467 = sld [smem:[#allocation8 + $0x1]]
        %v468 = vstv %s467
        %v469 = vmul.f32 %v468, %v306
        %s470 = sld [smem:[#allocation8 + $0x8]]
        %v471 = vstv %s470
        %v472 = vmul.f32 %v471, %v306
        %474 = vrot.lane.b32.xlu0 %v472, 112
        %v475 = vpop.permute.xlu0 %474
        %v476 = vrot.slane %v475, 1
        %v477 = vsel %vm316, %v475, %v476
        %v479 = vadd.f32 %v469, %v477
        %s480 = sld [smem:[#allocation8 + $0xf]]
        %v481 = vstv %s480
        %v482 = vmul.f32 %v481, %v306
        %484 = vrot.lane.b32.xlu0 %v482, 96
        %v485 = vpop.permute.xlu0 %484
        %v486 = vrot.slane %v485, 1
        %v487 = vsel %vm327, %v485, %v486
        %v489 = vadd.f32 %v479, %v487
        %s490 = sld [smem:[#allocation8 + $0x16]]
        %v491 = vstv %s490
        %v492 = vmul.f32 %v491, %v306
        %494 = vrot.lane.b32.xlu0 %v492, 80
        %v495 = vpop.permute.xlu0 %494
        %v496 = vrot.slane %v495, 1
        %v497 = vsel %vm338, %v495, %v496
        %v499 = vadd.f32 %v489, %v497
        %s500 = sld [smem:[#allocation8 + $0x1d]]
        %v501 = vstv %s500
        %v502 = vmul.f32 %v501, %v343
        %504 = vrot.lane.b32.xlu0 %v502, 64
        %v505 = vpop.permute.xlu0 %504
        %v506 = vrot.slane %v505, 7
        %v507 = vsel %vm350, %v506, %v505
        %v509 = vadd.f32 %v499, %v507
        %s510 = sld [smem:[#allocation8 + $0x24]]
        %v511 = vstv %s510
        %v512 = vmul.f32 %v511, %v343
        %514 = vrot.lane.b32.xlu0 %v512, 48
        %v515 = vpop.permute.xlu0 %514
        %v516 = vrot.slane %v515, 7
        %v517 = vsel %vm361, %v516, %v515
        %v519 = vadd.f32 %v509, %v517
        %s520 = sld [smem:[#allocation8 + $0x2b]]
        %v521 = vstv %s520
        %v522 = vmul.f32 %v521, %v343
        %524 = vrot.lane.b32.xlu0 %v522, 32
        %v525 = vpop.permute.xlu0 %524
        %v526 = vrot.slane %v525, 7
        %v527 = vsel %vm372, %v526, %v525
        %v529 = vadd.f32 %v519, %v527
        %s530 = sld [smem:[#allocation8 + $0x32]]
        %v531 = vstv %s530
        %v532 = vmul.f32 %v531, %v377
        %v533 = vadd.f32 %v529, %v532
        %s534 = sld [smem:[#allocation8 + $0x39]]
        %v535 = vstv %s534
        %v536 = vmul.f32 %v535, %v377
        %538 = vrot.lane.b32.xlu0 %v536, 112
        %v539 = vpop.permute.xlu0 %538
        %v540 = vrot.slane %v539, 1
        %v541 = vsel %vm316, %v539, %v540
        %v543 = vadd.f32 %v533, %v541
        %s544 = sld [smem:[#allocation8 + $0x40]]
        %v545 = vstv %s544
        %v546 = vmul.f32 %v545, %v377
        %548 = vrot.lane.b32.xlu0 %v546, 96
        %v549 = vpop.permute.xlu0 %548
        %v550 = vrot.slane %v549, 1
        %v551 = vsel %vm327, %v549, %v550
        %v553 = vadd.f32 %v543, %v551
        %s554 = sld [smem:[#allocation8 + $0x47]]
        %v555 = vstv %s554
        %v556 = vmul.f32 %v555, %v377
        %558 = vrot.lane.b32.xlu0 %v556, 80
        %v559 = vpop.permute.xlu0 %558
        %v560 = vrot.slane %v559, 1
        %v561 = vsel %vm338, %v559, %v560
        %v563 = vadd.f32 %v553, %v561
        %s564 = sld [smem:[#allocation8 + $0x4e]]
        %v565 = vstv %s564
        %v566 = vmul.f32 %v565, %v412
        %568 = vrot.lane.b32.xlu0 %v566, 64
        %v569 = vpop.permute.xlu0 %568
        %v570 = vrot.slane %v569, 7
        %v571 = vsel %vm350, %v570, %v569
        %v573 = vadd.f32 %v563, %v571
        %s574 = sld [smem:[#allocation8 + $0x55]]
        %v575 = vstv %s574
        %v576 = vmul.f32 %v575, %v412
        %578 = vrot.lane.b32.xlu0 %v576, 48
        %v579 = vpop.permute.xlu0 %578
        %v580 = vrot.slane %v579, 7
        %v581 = vsel %vm361, %v580, %v579
        %v583 = vadd.f32 %v573, %v581
        %s584 = sld [smem:[#allocation8 + $0x5c]]
        %v585 = vstv %s584
        %v586 = vmul.f32 %v585, %v412
        %588 = vrot.lane.b32.xlu0 %v586, 32
        %v589 = vpop.permute.xlu0 %588
        %v590 = vrot.slane %v589, 7
        %v591 = vsel %vm372, %v590, %v589
        %v593 = vadd.f32 %v583, %v591
        %v594 = vadd.s32 %v303, 4294967294
        %v595 = vadd.s32 %v304, 4294967294
        %vm596 = vcmp.ge.s32.totalorder %v594, 0
        %vm597 = vcmp.ge.s32.totalorder %v595, 0
        %vm598 = vcmp.lt.s32.totalorder %v594, 16
        %vm599 = vcmp.lt.s32.totalorder %v595, 16
        %vm600 = vmand %vm596, %vm598
        %vm601 = vmand %vm597, %vm599
        %v603 = vperm.slane %v593, 0
        %v604 = vperm.slane %v593, 1
        %v605 = vperm.slane %v593, 2
        %606 = vrot.lane.b32.xlu0 %v603, 50
        %v607 = vpop.permute.xlu0 %606
        %608 = vrot.lane.b32.xlu0 %v604, 50
        %v609 = vpop.permute.xlu0 %608
        %610 = vrot.lane.b32.xlu0 %v605, 50
        %v611 = vpop.permute.xlu0 %610
        %vm612 = vcmask 408576
        %v613 = vsel %vm612, %v607, %v609
        %v614 = vsel %vm612, %v609, %v611
        %v617 = vsel %vm600, %v613, 0.0
        %v618 = vsel %vm601, %v614, 0.0
        %s619 = sld [smem:[#allocation8 + $0x2]]
        %v620 = vstv %s619
        %v621 = vmul.f32 %v620, %v306
        %s622 = sld [smem:[#allocation8 + $0x9]]
        %v623 = vstv %s622
        %v624 = vmul.f32 %v623, %v306
        %626 = vrot.lane.b32.xlu0 %v624, 112
        %v627 = vpop.permute.xlu0 %626
        %v628 = vrot.slane %v627, 1
        %v629 = vsel %vm316, %v627, %v628
        %v631 = vadd.f32 %v621, %v629
        %s632 = sld [smem:[#allocation8 + $0x10]]
        %v633 = vstv %s632
        %v634 = vmul.f32 %v633, %v306
        %636 = vrot.lane.b32.xlu0 %v634, 96
        %v637 = vpop.permute.xlu0 %636
        %v638 = vrot.slane %v637, 1
        %v639 = vsel %vm327, %v637, %v638
        %v641 = vadd.f32 %v631, %v639
        %s642 = sld [smem:[#allocation8 + $0x17]]
        %v643 = vstv %s642
        %v644 = vmul.f32 %v643, %v306
        %646 = vrot.lane.b32.xlu0 %v644, 80
        %v647 = vpop.permute.xlu0 %646
        %v648 = vrot.slane %v647, 1
        %v649 = vsel %vm338, %v647, %v648
        %v651 = vadd.f32 %v641, %v649
        %s652 = sld [smem:[#allocation8 + $0x1e]]
        %v653 = vstv %s652
        %v654 = vmul.f32 %v653, %v343
        %656 = vrot.lane.b32.xlu0 %v654, 64
        %v657 = vpop.permute.xlu0 %656
        %v658 = vrot.slane %v657, 7
        %v659 = vsel %vm350, %v658, %v657
        %v661 = vadd.f32 %v651, %v659
        %s662 = sld [smem:[#allocation8 + $0x25]]
        %v663 = vstv %s662
        %v664 = vmul.f32 %v663, %v343
        %666 = vrot.lane.b32.xlu0 %v664, 48
        %v667 = vpop.permute.xlu0 %666
        %v668 = vrot.slane %v667, 7
        %v669 = vsel %vm361, %v668, %v667
        %v671 = vadd.f32 %v661, %v669
        %s672 = sld [smem:[#allocation8 + $0x2c]]
        %v673 = vstv %s672
        %v674 = vmul.f32 %v673, %v343
        %676 = vrot.lane.b32.xlu0 %v674, 32
        %v677 = vpop.permute.xlu0 %676
        %v678 = vrot.slane %v677, 7
        %v679 = vsel %vm372, %v678, %v677
        %v681 = vadd.f32 %v671, %v679
        %s682 = sld [smem:[#allocation8 + $0x33]]
        %v683 = vstv %s682
        %v684 = vmul.f32 %v683, %v377
        %v685 = vadd.f32 %v681, %v684
        %s686 = sld [smem:[#allocation8 + $0x3a]]
        %v687 = vstv %s686
        %v688 = vmul.f32 %v687, %v377
        %690 = vrot.lane.b32.xlu0 %v688, 112
        %v691 = vpop.permute.xlu0 %690
        %v692 = vrot.slane %v691, 1
        %v693 = vsel %vm316, %v691, %v692
        %v695 = vadd.f32 %v685, %v693
        %s696 = sld [smem:[#allocation8 + $0x41]]
        %v697 = vstv %s696
        %v698 = vmul.f32 %v697, %v377
        %700 = vrot.lane.b32.xlu0 %v698, 96
        %v701 = vpop.permute.xlu0 %700
        %v702 = vrot.slane %v701, 1
        %v703 = vsel %vm327, %v701, %v702
        %v705 = vadd.f32 %v695, %v703
        %s706 = sld [smem:[#allocation8 + $0x48]]
        %v707 = vstv %s706
        %v708 = vmul.f32 %v707, %v377
        %710 = vrot.lane.b32.xlu0 %v708, 80
        %v711 = vpop.permute.xlu0 %710
        %v712 = vrot.slane %v711, 1
        %v713 = vsel %vm338, %v711, %v712
        %v715 = vadd.f32 %v705, %v713
        %s716 = sld [smem:[#allocation8 + $0x4f]]
        %v717 = vstv %s716
        %v718 = vmul.f32 %v717, %v412
        %720 = vrot.lane.b32.xlu0 %v718, 64
        %v721 = vpop.permute.xlu0 %720
        %v722 = vrot.slane %v721, 7
        %v723 = vsel %vm350, %v722, %v721
        %v725 = vadd.f32 %v715, %v723
        %s726 = sld [smem:[#allocation8 + $0x56]]
        %v727 = vstv %s726
        %v728 = vmul.f32 %v727, %v412
        %730 = vrot.lane.b32.xlu0 %v728, 48
        %v731 = vpop.permute.xlu0 %730
        %v732 = vrot.slane %v731, 7
        %v733 = vsel %vm361, %v732, %v731
        %v735 = vadd.f32 %v725, %v733
        %s736 = sld [smem:[#allocation8 + $0x5d]]
        %v737 = vstv %s736
        %v738 = vmul.f32 %v737, %v412
        %740 = vrot.lane.b32.xlu0 %v738, 32
        %v741 = vpop.permute.xlu0 %740
        %v742 = vrot.slane %v741, 7
        %v743 = vsel %vm372, %v742, %v741
        %v745 = vadd.f32 %v735, %v743
        %v746 = vadd.s32 %v303, 4294967295
        %v747 = vadd.s32 %v304, 4294967295
        %vm748 = vcmp.ge.s32.totalorder %v746, 0
        %vm749 = vcmp.ge.s32.totalorder %v747, 0
        %vm750 = vcmp.lt.s32.totalorder %v746, 16
        %vm751 = vcmp.lt.s32.totalorder %v747, 16
        %vm752 = vmand %vm748, %vm750
        %vm753 = vmand %vm749, %vm751
        %v755 = vperm.slane %v745, 0
        %v756 = vperm.slane %v745, 1
        %v757 = vperm.slane %v745, 2
        %758 = vrot.lane.b32.xlu0 %v755, 49
        %v759 = vpop.permute.xlu0 %758
        %760 = vrot.lane.b32.xlu0 %v756, 49
        %v761 = vpop.permute.xlu0 %760
        %762 = vrot.lane.b32.xlu0 %v757, 49
        %v763 = vpop.permute.xlu0 %762
        %vm764 = vcmask 400384
        %v765 = vsel %vm764, %v759, %v761
        %v766 = vsel %vm764, %v761, %v763
        %v769 = vsel %vm752, %v765, 0.0
        %v770 = vsel %vm753, %v766, 0.0
        %s771 = sld [smem:[#allocation8 + $0x3]]
        %v772 = vstv %s771
        %v773 = vmul.f32 %v772, %v306
        %s774 = sld [smem:[#allocation8 + $0xa]]
        %v775 = vstv %s774
        %v776 = vmul.f32 %v775, %v306
        %778 = vrot.lane.b32.xlu0 %v776, 112
        %v779 = vpop.permute.xlu0 %778
        %v780 = vrot.slane %v779, 1
        %v781 = vsel %vm316, %v779, %v780
        %v783 = vadd.f32 %v773, %v781
        %s784 = sld [smem:[#allocation8 + $0x11]]
        %v785 = vstv %s784
        %v786 = vmul.f32 %v785, %v306
        %788 = vrot.lane.b32.xlu0 %v786, 96
        %v789 = vpop.permute.xlu0 %788
        %v790 = vrot.slane %v789, 1
        %v791 = vsel %vm327, %v789, %v790
        %v793 = vadd.f32 %v783, %v791
        %s794 = sld [smem:[#allocation8 + $0x18]]
        %v795 = vld [vmem:[#allocation2 + $0x1] sm:$0x3]
        %v796 = vstv %s794
        %v797 = vmul.f32 %v796, %v795
        %799 = vrot.lane.b32.xlu0 %v797, 80
        %v800 = vpop.permute.xlu0 %799
        %v801 = vrot.slane %v800, 7
        %v802 = vsel %vm338, %v801, %v800
        %v804 = vadd.f32 %v793, %v802
        %s805 = sld [smem:[#allocation8 + $0x1f]]
        %v806 = vstv %s805
        %v807 = vmul.f32 %v806, %v343
        %809 = vrot.lane.b32.xlu0 %v807, 64
        %v810 = vpop.permute.xlu0 %809
        %v811 = vrot.slane %v810, 7
        %v812 = vsel %vm350, %v811, %v810
        %v814 = vadd.f32 %v804, %v812
        %s815 = sld [smem:[#allocation8 + $0x26]]
        %v816 = vstv %s815
        %v817 = vmul.f32 %v816, %v343
        %819 = vrot.lane.b32.xlu0 %v817, 48
        %v820 = vpop.permute.xlu0 %819
        %v821 = vrot.slane %v820, 7
        %v822 = vsel %vm361, %v821, %v820
        %v824 = vadd.f32 %v814, %v822
        %s825 = sld [smem:[#allocation8 + $0x2d]]
        %v826 = vstv %s825
        %v827 = vmul.f32 %v826, %v343
        %829 = vrot.lane.b32.xlu0 %v827, 32
        %v830 = vpop.permute.xlu0 %829
        %v831 = vrot.slane %v830, 7
        %v832 = vsel %vm372, %v831, %v830
        %v834 = vadd.f32 %v824, %v832
        %s835 = sld [smem:[#allocation8 + $0x34]]
        %v836 = vstv %s835
        %v837 = vmul.f32 %v836, %v377
        %v838 = vadd.f32 %v834, %v837
        %s839 = sld [smem:[#allocation8 + $0x3b]]
        %v840 = vstv %s839
        %v841 = vmul.f32 %v840, %v377
        %843 = vrot.lane.b32.xlu0 %v841, 112
        %v844 = vpop.permute.xlu0 %843
        %v845 = vrot.slane %v844, 1
        %v846 = vsel %vm316, %v844, %v845
        %v848 = vadd.f32 %v838, %v846
        %s849 = sld [smem:[#allocation8 + $0x42]]
        %v850 = vstv %s849
        %v851 = vmul.f32 %v850, %v377
        %853 = vrot.lane.b32.xlu0 %v851, 96
        %v854 = vpop.permute.xlu0 %853
        %v855 = vrot.slane %v854, 1
        %v856 = vsel %vm327, %v854, %v855
        %v858 = vadd.f32 %v848, %v856
        %s859 = sld [smem:[#allocation8 + $0x49]]
        %v860 = vld [vmem:[%s276 + $0x1] sm:$0x3]
        %v861 = vstv %s859
        %v862 = vmul.f32 %v861, %v860
        %864 = vrot.lane.b32.xlu0 %v862, 80
        %v865 = vpop.permute.xlu0 %864
        %v866 = vrot.slane %v865, 7
        %v867 = vsel %vm338, %v866, %v865
        %v869 = vadd.f32 %v858, %v867
        %s870 = sld [smem:[#allocation8 + $0x50]]
        %v871 = vstv %s870
        %v872 = vmul.f32 %v871, %v412
        %874 = vrot.lane.b32.xlu0 %v872, 64
        %v875 = vpop.permute.xlu0 %874
        %v876 = vrot.slane %v875, 7
        %v877 = vsel %vm350, %v876, %v875
        %v879 = vadd.f32 %v869, %v877
        %s880 = sld [smem:[#allocation8 + $0x57]]
        %v881 = vstv %s880
        %v882 = vmul.f32 %v881, %v412
        %884 = vrot.lane.b32.xlu0 %v882, 48
        %v885 = vpop.permute.xlu0 %884
        %v886 = vrot.slane %v885, 7
        %v887 = vsel %vm361, %v886, %v885
        %v889 = vadd.f32 %v879, %v887
        %s890 = sld [smem:[#allocation8 + $0x5e]]
        %v891 = vstv %s890
        %v892 = vmul.f32 %v891, %v412
        %894 = vrot.lane.b32.xlu0 %v892, 32
        %v895 = vpop.permute.xlu0 %894
        %v896 = vrot.slane %v895, 7
        %v897 = vsel %vm372, %v896, %v895
        %v899 = vadd.f32 %v889, %v897
        %s900 = sld [smem:[#allocation8 + $0x4]]
        %v901 = vstv %s900
        %v902 = vmul.f32 %v901, %v306
        %s903 = sld [smem:[#allocation8 + $0xb]]
        %v904 = vstv %s903
        %v905 = vmul.f32 %v904, %v306
        %907 = vrot.lane.b32.xlu0 %v905, 112
        %v908 = vpop.permute.xlu0 %907
        %v909 = vrot.slane %v908, 1
        %v910 = vsel %vm316, %v908, %v909
        %v912 = vadd.f32 %v902, %v910
        %s913 = sld [smem:[#allocation8 + $0x12]]
        %v914 = vstv %s913
        %v915 = vmul.f32 %v914, %v306
        %917 = vrot.lane.b32.xlu0 %v915, 96
        %v918 = vpop.permute.xlu0 %917
        %v919 = vrot.slane %v918, 1
        %v920 = vsel %vm327, %v918, %v919
        %v922 = vadd.f32 %v912, %v920
        %s923 = sld [smem:[#allocation8 + $0x19]]
        %v924 = vstv %s923
        %v925 = vmul.f32 %v924, %v343
        %927 = vrot.lane.b32.xlu0 %v925, 80
        %v928 = vpop.permute.xlu0 %927
        %v929 = vrot.slane %v928, 7
        %v930 = vsel %vm338, %v929, %v928
        %v932 = vadd.f32 %v922, %v930
        %s933 = sld [smem:[#allocation8 + $0x20]]
        %v934 = vstv %s933
        %v935 = vmul.f32 %v934, %v343
        %937 = vrot.lane.b32.xlu0 %v935, 64
        %v938 = vpop.permute.xlu0 %937
        %v939 = vrot.slane %v938, 7
        %v940 = vsel %vm350, %v939, %v938
        %v942 = vadd.f32 %v932, %v940
        %s943 = sld [smem:[#allocation8 + $0x27]]
        %v944 = vstv %s943
        %v945 = vmul.f32 %v944, %v343
        %947 = vrot.lane.b32.xlu0 %v945, 48
        %v948 = vpop.permute.xlu0 %947
        %v949 = vrot.slane %v948, 7
        %v950 = vsel %vm361, %v949, %v948
        %v952 = vadd.f32 %v942, %v950
        %s953 = sld [smem:[#allocation8 + $0x2e]]
        %v954 = vstv %s953
        %v955 = vmul.f32 %v954, %v343
        %957 = vrot.lane.b32.xlu0 %v955, 32
        %v958 = vpop.permute.xlu0 %957
        %v959 = vrot.slane %v958, 7
        %v960 = vsel %vm372, %v959, %v958
        %v962 = vadd.f32 %v952, %v960
        %s963 = sld [smem:[#allocation8 + $0x35]]
        %v964 = vstv %s963
        %v965 = vmul.f32 %v964, %v377
        %v966 = vadd.f32 %v962, %v965
        %s967 = sld [smem:[#allocation8 + $0x3c]]
        %v968 = vstv %s967
        %v969 = vmul.f32 %v968, %v377
        %971 = vrot.lane.b32.xlu0 %v969, 112
        %v972 = vpop.permute.xlu0 %971
        %v973 = vrot.slane %v972, 1
        %v974 = vsel %vm316, %v972, %v973
        %v976 = vadd.f32 %v966, %v974
        %s977 = sld [smem:[#allocation8 + $0x43]]
        %v978 = vstv %s977
        %v979 = vmul.f32 %v978, %v377
        %981 = vrot.lane.b32.xlu0 %v979, 96
        %v982 = vpop.permute.xlu0 %981
        %v983 = vrot.slane %v982, 1
        %v984 = vsel %vm327, %v982, %v983
        %v986 = vadd.f32 %v976, %v984
        %s987 = sld [smem:[#allocation8 + $0x4a]]
        %v988 = vstv %s987
        %v989 = vmul.f32 %v988, %v412
        %991 = vrot.lane.b32.xlu0 %v989, 80
        %v992 = vpop.permute.xlu0 %991
        %v993 = vrot.slane %v992, 7
        %v994 = vsel %vm338, %v993, %v992
        %v996 = vadd.f32 %v986, %v994
        %s997 = sld [smem:[#allocation8 + $0x51]]
        %v998 = vstv %s997
        %v999 = vmul.f32 %v998, %v412
        %1001 = vrot.lane.b32.xlu0 %v999, 64
        %v1002 = vpop.permute.xlu0 %1001
        %v1003 = vrot.slane %v1002, 7
        %v1004 = vsel %vm350, %v1003, %v1002
        %v1006 = vadd.f32 %v996, %v1004
        %s1007 = sld [smem:[#allocation8 + $0x58]]
        %v1008 = vstv %s1007
        %v1009 = vmul.f32 %v1008, %v412
        %1011 = vrot.lane.b32.xlu0 %v1009, 48
        %v1012 = vpop.permute.xlu0 %1011
        %v1013 = vrot.slane %v1012, 7
        %v1014 = vsel %vm361, %v1013, %v1012
        %v1016 = vadd.f32 %v1006, %v1014
        %s1017 = sld [smem:[#allocation8 + $0x5f]]
        %v1018 = vstv %s1017
        %v1019 = vmul.f32 %v1018, %v412
        %1021 = vrot.lane.b32.xlu0 %v1019, 32
        %v1022 = vpop.permute.xlu0 %1021
        %v1023 = vrot.slane %v1022, 7
        %v1024 = vsel %vm372, %v1023, %v1022
        %v1026 = vadd.f32 %v1016, %v1024
        %v1027 = vadd.s32 %v303, 1
        %v1028 = vadd.s32 %v304, 1
        %vm1029 = vcmp.ge.s32.totalorder %v1027, 0
        %vm1030 = vcmp.ge.s32.totalorder %v1028, 0
        %vm1031 = vcmp.lt.s32.totalorder %v1027, 16
        %vm1032 = vcmp.lt.s32.totalorder %v1028, 16
        %vm1033 = vmand %vm1029, %vm1031
        %vm1034 = vmand %vm1030, %vm1032
        %v1036 = vperm.slane %v1026, 0
        %v1037 = vperm.slane %v1026, 1
        %v1038 = vperm.slane %v1026, 2
        %1039 = vrot.lane.b32.xlu0 %v1036, 47
        %v1040 = vpop.permute.xlu0 %1039
        %1041 = vrot.lane.b32.xlu0 %v1037, 47
        %v1042 = vpop.permute.xlu0 %1041
        %1043 = vrot.lane.b32.xlu0 %v1038, 47
        %v1044 = vpop.permute.xlu0 %1043
        %vm1045 = vcmask 384000
        %v1046 = vsel %vm1045, %v1040, %v1042
        %v1047 = vsel %vm1045, %v1042, %v1044
        %v1050 = vsel %vm1033, %v1046, 0.0
        %v1051 = vsel %vm1034, %v1047, 0.0
        %s1052 = sld [smem:[#allocation8 + $0x5]]
        %v1053 = vstv %s1052
        %v1054 = vmul.f32 %v1053, %v306
        %s1055 = sld [smem:[#allocation8 + $0xc]]
        %v1056 = vstv %s1055
        %v1057 = vmul.f32 %v1056, %v306
        %1059 = vrot.lane.b32.xlu0 %v1057, 112
        %v1060 = vpop.permute.xlu0 %1059
        %v1061 = vrot.slane %v1060, 1
        %v1062 = vsel %vm316, %v1060, %v1061
        %v1064 = vadd.f32 %v1054, %v1062
        %s1065 = sld [smem:[#allocation8 + $0x13]]
        %v1066 = vstv %s1065
        %v1067 = vmul.f32 %v1066, %v306
        %1069 = vrot.lane.b32.xlu0 %v1067, 96
        %v1070 = vpop.permute.xlu0 %1069
        %v1071 = vrot.slane %v1070, 1
        %v1072 = vsel %vm327, %v1070, %v1071
        %v1074 = vadd.f32 %v1064, %v1072
        %s1075 = sld [smem:[#allocation8 + $0x1a]]
        %v1076 = vstv %s1075
        %v1077 = vmul.f32 %v1076, %v343
        %1079 = vrot.lane.b32.xlu0 %v1077, 80
        %v1080 = vpop.permute.xlu0 %1079
        %v1081 = vrot.slane %v1080, 7
        %v1082 = vsel %vm338, %v1081, %v1080
        %v1084 = vadd.f32 %v1074, %v1082
        %s1085 = sld [smem:[#allocation8 + $0x21]]
        %v1086 = vstv %s1085
        %v1087 = vmul.f32 %v1086, %v343
        %1089 = vrot.lane.b32.xlu0 %v1087, 64
        %v1090 = vpop.permute.xlu0 %1089
        %v1091 = vrot.slane %v1090, 7
        %v1092 = vsel %vm350, %v1091, %v1090
        %v1094 = vadd.f32 %v1084, %v1092
        %s1095 = sld [smem:[#allocation8 + $0x28]]
        %v1096 = vstv %s1095
        %v1097 = vmul.f32 %v1096, %v343
        %1099 = vrot.lane.b32.xlu0 %v1097, 48
        %v1100 = vpop.permute.xlu0 %1099
        %v1101 = vrot.slane %v1100, 7
        %v1102 = vsel %vm361, %v1101, %v1100
        %v1104 = vadd.f32 %v1094, %v1102
        %s1105 = sld [smem:[#allocation8 + $0x2f]]
        %v1106 = vstv %s1105
        %v1107 = vmul.f32 %v1106, %v343
        %1109 = vrot.lane.b32.xlu0 %v1107, 32
        %v1110 = vpop.permute.xlu0 %1109
        %v1111 = vrot.slane %v1110, 7
        %v1112 = vsel %vm372, %v1111, %v1110
        %v1114 = vadd.f32 %v1104, %v1112
        %s1115 = sld [smem:[#allocation8 + $0x36]]
        %v1116 = vstv %s1115
        %v1117 = vmul.f32 %v1116, %v377
        %v1118 = vadd.f32 %v1114, %v1117
        %s1119 = sld [smem:[#allocation8 + $0x3d]]
        %v1120 = vstv %s1119
        %v1121 = vmul.f32 %v1120, %v377
        %1123 = vrot.lane.b32.xlu0 %v1121, 112
        %v1124 = vpop.permute.xlu0 %1123
        %v1125 = vrot.slane %v1124, 1
        %v1126 = vsel %vm316, %v1124, %v1125
        %v1128 = vadd.f32 %v1118, %v1126
        %s1129 = sld [smem:[#allocation8 + $0x44]]
        %v1130 = vstv %s1129
        %v1131 = vmul.f32 %v1130, %v377
        %1133 = vrot.lane.b32.xlu0 %v1131, 96
        %v1134 = vpop.permute.xlu0 %1133
        %v1135 = vrot.slane %v1134, 1
        %v1136 = vsel %vm327, %v1134, %v1135
        %v1138 = vadd.f32 %v1128, %v1136
        %s1139 = sld [smem:[#allocation8 + $0x4b]]
        %v1140 = vstv %s1139
        %v1141 = vmul.f32 %v1140, %v412
        %1143 = vrot.lane.b32.xlu0 %v1141, 80
        %v1144 = vpop.permute.xlu0 %1143
        %v1145 = vrot.slane %v1144, 7
        %v1146 = vsel %vm338, %v1145, %v1144
        %v1148 = vadd.f32 %v1138, %v1146
        %s1149 = sld [smem:[#allocation8 + $0x52]]
        %v1150 = vstv %s1149
        %v1151 = vmul.f32 %v1150, %v412
        %1153 = vrot.lane.b32.xlu0 %v1151, 64
        %v1154 = vpop.permute.xlu0 %1153
        %v1155 = vrot.slane %v1154, 7
        %v1156 = vsel %vm350, %v1155, %v1154
        %v1158 = vadd.f32 %v1148, %v1156
        %s1159 = sld [smem:[#allocation8 + $0x59]]
        %v1160 = vstv %s1159
        %v1161 = vmul.f32 %v1160, %v412
        %1163 = vrot.lane.b32.xlu0 %v1161, 48
        %v1164 = vpop.permute.xlu0 %1163
        %v1165 = vrot.slane %v1164, 7
        %v1166 = vsel %vm361, %v1165, %v1164
        %v1168 = vadd.f32 %v1158, %v1166
        %s1169 = sld [smem:[#allocation8 + $0x60]]
        %v1170 = vstv %s1169
        %v1171 = vmul.f32 %v1170, %v412
        %1173 = vrot.lane.b32.xlu0 %v1171, 32
        %v1174 = vpop.permute.xlu0 %1173
        %v1175 = vrot.slane %v1174, 7
        %v1176 = vsel %vm372, %v1175, %v1174
        %v1178 = vadd.f32 %v1168, %v1176
        %v1179 = vadd.s32 %v303, 2
        %v1180 = vadd.s32 %v304, 2
        %vm1181 = vcmp.ge.s32.totalorder %v1179, 0
        %vm1182 = vcmp.ge.s32.totalorder %v1180, 0
        %vm1183 = vcmp.lt.s32.totalorder %v1179, 16
        %vm1184 = vcmp.lt.s32.totalorder %v1180, 16
        %vm1185 = vmand %vm1181, %vm1183
        %vm1186 = vmand %vm1182, %vm1184
        %v1188 = vperm.slane %v1178, 0
        %v1189 = vperm.slane %v1178, 1
        %v1190 = vperm.slane %v1178, 2
        %1191 = vrot.lane.b32.xlu0 %v1188, 46
        %v1192 = vpop.permute.xlu0 %1191
        %1193 = vrot.lane.b32.xlu0 %v1189, 46
        %v1194 = vpop.permute.xlu0 %1193
        %1195 = vrot.lane.b32.xlu0 %v1190, 46
        %v1196 = vpop.permute.xlu0 %1195
        %vm1197 = vcmask 375808
        %v1198 = vsel %vm1197, %v1192, %v1194
        %v1199 = vsel %vm1197, %v1194, %v1196
        %v1202 = vsel %vm1185, %v1198, 0.0
        %v1203 = vsel %vm1186, %v1199, 0.0
        %s1204 = sld [smem:[#allocation8 + $0x6]]
        %v1205 = vstv %s1204
        %v1206 = vmul.f32 %v1205, %v306
        %s1207 = sld [smem:[#allocation8 + $0xd]]
        %v1208 = vstv %s1207
        %v1209 = vmul.f32 %v1208, %v306
        %1211 = vrot.lane.b32.xlu0 %v1209, 112
        %v1212 = vpop.permute.xlu0 %1211
        %v1213 = vrot.slane %v1212, 1
        %v1214 = vsel %vm316, %v1212, %v1213
        %v1216 = vadd.f32 %v1206, %v1214
        %s1217 = sld [smem:[#allocation8 + $0x14]]
        %v1218 = vstv %s1217
        %v1219 = vmul.f32 %v1218, %v306
        %1221 = vrot.lane.b32.xlu0 %v1219, 96
        %v1222 = vpop.permute.xlu0 %1221
        %v1223 = vrot.slane %v1222, 1
        %v1224 = vsel %vm327, %v1222, %v1223
        %v1226 = vadd.f32 %v1216, %v1224
        %s1227 = sld [smem:[#allocation8 + $0x1b]]
        %v1228 = vstv %s1227
        %v1229 = vmul.f32 %v1228, %v343
        %1231 = vrot.lane.b32.xlu0 %v1229, 80
        %v1232 = vpop.permute.xlu0 %1231
        %v1233 = vrot.slane %v1232, 7
        %v1234 = vsel %vm338, %v1233, %v1232
        %v1236 = vadd.f32 %v1226, %v1234
        %s1237 = sld [smem:[#allocation8 + $0x22]]
        %v1238 = vstv %s1237
        %v1239 = vmul.f32 %v1238, %v343
        %1241 = vrot.lane.b32.xlu0 %v1239, 64
        %v1242 = vpop.permute.xlu0 %1241
        %v1243 = vrot.slane %v1242, 7
        %v1244 = vsel %vm350, %v1243, %v1242
        %v1246 = vadd.f32 %v1236, %v1244
        %s1247 = sld [smem:[#allocation8 + $0x29]]
        %v1248 = vstv %s1247
        %v1249 = vmul.f32 %v1248, %v343
        %1251 = vrot.lane.b32.xlu0 %v1249, 48
        %v1252 = vpop.permute.xlu0 %1251
        %v1253 = vrot.slane %v1252, 7
        %v1254 = vsel %vm361, %v1253, %v1252
        %v1256 = vadd.f32 %v1246, %v1254
        %s1257 = sld [smem:[#allocation8 + $0x30]]
        %v1258 = vstv %s1257
        %v1259 = vmul.f32 %v1258, %v343
        %1261 = vrot.lane.b32.xlu0 %v1259, 32
        %v1262 = vpop.permute.xlu0 %1261
        %v1263 = vrot.slane %v1262, 7
        %v1264 = vsel %vm372, %v1263, %v1262
        %v1266 = vadd.f32 %v1256, %v1264
        %s1267 = sld [smem:[#allocation8 + $0x37]]
        %v1268 = vstv %s1267
        %v1269 = vmul.f32 %v1268, %v377
        %v1270 = vadd.f32 %v1266, %v1269
        %s1271 = sld [smem:[#allocation8 + $0x3e]]
        %v1272 = vstv %s1271
        %v1273 = vmul.f32 %v1272, %v377
        %1275 = vrot.lane.b32.xlu0 %v1273, 112
        %v1276 = vpop.permute.xlu0 %1275
        %v1277 = vrot.slane %v1276, 1
        %v1278 = vsel %vm316, %v1276, %v1277
        %v1280 = vadd.f32 %v1270, %v1278
        %s1281 = sld [smem:[#allocation8 + $0x45]]
        %v1282 = vstv %s1281
        %v1283 = vmul.f32 %v1282, %v377
        %1285 = vrot.lane.b32.xlu0 %v1283, 96
        %v1286 = vpop.permute.xlu0 %1285
        %v1287 = vrot.slane %v1286, 1
        %v1288 = vsel %vm327, %v1286, %v1287
        %v1290 = vadd.f32 %v1280, %v1288
        %s1291 = sld [smem:[#allocation8 + $0x4c]]
        %v1292 = vstv %s1291
        %v1293 = vmul.f32 %v1292, %v412
        %1295 = vrot.lane.b32.xlu0 %v1293, 80
        %v1296 = vpop.permute.xlu0 %1295
        %v1297 = vrot.slane %v1296, 7
        %v1298 = vsel %vm338, %v1297, %v1296
        %v1300 = vadd.f32 %v1290, %v1298
        %s1301 = sld [smem:[#allocation8 + $0x53]]
        %v1302 = vstv %s1301
        %v1303 = vmul.f32 %v1302, %v412
        %1305 = vrot.lane.b32.xlu0 %v1303, 64
        %v1306 = vpop.permute.xlu0 %1305
        %v1307 = vrot.slane %v1306, 7
        %v1308 = vsel %vm350, %v1307, %v1306
        %v1310 = vadd.f32 %v1300, %v1308
        %s1311 = sld [smem:[#allocation8 + $0x5a]]
        %v1312 = vstv %s1311
        %v1313 = vmul.f32 %v1312, %v412
        %1315 = vrot.lane.b32.xlu0 %v1313, 48
        %v1316 = vpop.permute.xlu0 %1315
        %v1317 = vrot.slane %v1316, 7
        %v1318 = vsel %vm361, %v1317, %v1316
        %v1320 = vadd.f32 %v1310, %v1318
        %s1321 = sld [smem:[#allocation8 + $0x61]]
        %v1322 = vstv %s1321
        %v1323 = vmul.f32 %v1322, %v412
        %1325 = vrot.lane.b32.xlu0 %v1323, 32
        %v1326 = vpop.permute.xlu0 %1325
        %v1327 = vrot.slane %v1326, 7
        %v1328 = vsel %vm372, %v1327, %v1326
        %v1330 = vadd.f32 %v1320, %v1328
        %v1331 = vadd.s32 %v303, 3
        %v1332 = vadd.s32 %v304, 3
        %vm1333 = vcmp.ge.s32.totalorder %v1331, 0
        %vm1334 = vcmp.ge.s32.totalorder %v1332, 0
        %vm1335 = vcmp.lt.s32.totalorder %v1331, 16
        %vm1336 = vcmp.lt.s32.totalorder %v1332, 16
        %vm1337 = vmand %vm1333, %vm1335
        %vm1338 = vmand %vm1334, %vm1336
        %v1340 = vperm.slane %v1330, 0
        %v1341 = vperm.slane %v1330, 1
        %v1342 = vperm.slane %v1330, 2
        %1343 = vrot.lane.b32.xlu0 %v1340, 45
        %v1344 = vpop.permute.xlu0 %1343
        %1345 = vrot.lane.b32.xlu0 %v1341, 45
        %v1346 = vpop.permute.xlu0 %1345
        %1347 = vrot.lane.b32.xlu0 %v1342, 45
        %v1348 = vpop.permute.xlu0 %1347
        %vm1349 = vcmask 367616
        %v1350 = vsel %vm1349, %v1344, %v1346
        %v1351 = vsel %vm1349, %v1346, %v1348
        %v1354 = vsel %vm1337, %v1350, 0.0
        %v1355 = vsel %vm1338, %v1351, 0.0
        %v1356 = vadd.f32 %v465, %v617
        %v1357 = vadd.f32 %v466, %v618
        %v1359 = vperm.slane %v899, 0
        %v1360 = vperm.slane %v899, 1
        %v1361 = vperm.slane %v899, 2
        %1362 = vrot.lane.b32.xlu0 %v1359, 48
        %v1363 = vpop.permute.xlu0 %1362
        %1364 = vrot.lane.b32.xlu0 %v1360, 48
        %v1365 = vpop.permute.xlu0 %1364
        %1366 = vrot.lane.b32.xlu0 %v1361, 48
        %v1367 = vpop.permute.xlu0 %1366
        %v1368 = vsel %vm361, %v1363, %v1365
        %v1369 = vsel %vm361, %v1365, %v1367
        %v1372 = vadd.f32 %v769, %v1368
        %v1373 = vadd.f32 %v770, %v1369
        %v1374 = vadd.f32 %v1050, %v1202
        %v1375 = vadd.f32 %v1051, %v1203
        %v1376 = vadd.f32 %v1356, %v1372
        %v1377 = vadd.f32 %v1357, %v1373
        %v1378 = vadd.f32 %v1374, %v1354
        %v1379 = vadd.f32 %v1375, %v1355
        %v1380 = vadd.f32 %v1376, %v1378
        %v1381 = vadd.f32 %v1377, %v1379
        %s1382 = sld [smem:[#allocation3]]
        %v1383 = vstv %s1382
        %v1384 = vadd.f32 %v1380, %v1383
        %v1385 = vadd.f32 %v1381, %v1383
        %v1386 = vsel %vm265, %v1384, 0.0
        %v1387 = vsel %vm265, %v1385, 0.0
        %v1388 = vadd.f32 %v1386, %v1387
        %1389 = vadd.xlane.f32.xlu0 %v1388
        %v1390 = vpop.xlane.xlu0 %1389
        %v1391 = vrcp.pop 256.0
        %v1392 = vmul.f32 256.0, %v1391
        %v1393 = vsub.f32 1.0, %v1392
        %v1394 = vmul.f32 %v1391, %v1393
        %v1395 = vadd.f32 %v1391, %v1394
        %vm1396 = vweird.f32 %v1391
        %v1397 = vsel %vm1396, %v1391, %v1395
        %v1398 = vmul.f32 %v1390, %v1397
        %v1399 = vsub.f32 %v1384, %v1398
        %v1400 = vsub.f32 %v1385, %v1398
        %v1401 = vmul.f32 %v1399, %v1399
        %v1402 = vmul.f32 %v1400, %v1400
        %v1403 = vsel %vm265, %v1401, 0.0
        %v1404 = vsel %vm265, %v1402, 0.0
        %v1405 = vadd.f32 %v1403, %v1404
        %1406 = vadd.xlane.f32.xlu0 %v1405
        %v1407 = vpop.xlane.xlu0 %1406
        %v1408 = vmul.f32 %v1407, %v1397
        %v1409 = vadd.f32 %v1408, 1e-05
        %v1410 = vrsqrt.pop %v1409
        %v1411 = vmul.f32 %v1410, %v1409
        %v1412 = vmul.f32 %v1411, %v1410
        %v1413 = vmul.f32 0.5, %v1412
        %v1414 = vsub.f32 1.5, %v1413
        %v1415 = vmul.f32 %v1410, %v1414
        %vm1416 = vweird.f32 %v1409
        %vm1417 = vweird.f32 %v1410
        %vm1418 = vmor %vm1416, %vm1417
        %v1419 = vsel %vm1418, %v1410, %v1415
        %v1420 = vrcp.pop %v1409
        %v1421 = vmul.f32 %v1409, %v1420
        %v1422 = vsub.f32 1.0, %v1421
        %v1423 = vmul.f32 %v1420, %v1422
        %v1424 = vadd.f32 %v1420, %v1423
        %vm1425 = vweird.f32 %v1409
        %vm1426 = vweird.f32 %v1420
        %vm1427 = vmor %vm1425, %vm1426
        %v1428 = vsel %vm1427, %v1420, %v1424
        %v1429 = vand.u32 2147483647, %v1409
        %vm1430 = vcmp.eq.f32.partialorder %v1429, 8.507059e+37
        %v1431 = vand.u32 %v1409, 2147483648
        %v1432 = vor.u32 1.1754944e-38, %v1431
        %v1433 = vsel %vm1430, %v1432, %v1428
        %v1434 = vmul.f32 %v1408, %v1433
        %v1435 = vadd.f32 %v1434, 1e-05
        %v1436 = vrsqrt.pop %v1435
        %v1437 = vmul.f32 %v1436, %v1435
        %v1438 = vmul.f32 %v1437, %v1436
        %v1439 = vmul.f32 0.5, %v1438
        %v1440 = vsub.f32 1.5, %v1439
        %v1441 = vmul.f32 %v1436, %v1440
        %vm1442 = vweird.f32 %v1435
        %vm1443 = vweird.f32 %v1436
        %vm1444 = vmor %vm1442, %vm1443
        %v1445 = vsel %vm1444, %v1436, %v1441
        %v1446 = vmul.f32 %v1419, %v1445
        %v1447 = vmul.f32 %v1399, %v1446
        %v1448 = vmul.f32 %v1400, %v1446
        %v1449 = vxor.u32 %v1447, 2147483648
        %v1450 = vxor.u32 %v1448, 2147483648
        %v1451 = vmul.f32 %v1449, 1.442695
        %v1452 = vpow.pop %v1451
        %v1453 = vmul.f32 %v1450, 1.442695
        %v1454 = vpow.pop %v1453
        %v1455 = vadd.f32 %v1452, 1.0
        %v1456 = vadd.f32 %v1454, 1.0
        %v1457 = vrcp.pop %v1455
        %v1458 = vmul.f32 %v1455, %v1457
        %v1459 = vsub.f32 1.0, %v1458
        %v1460 = vmul.f32 %v1457, %v1459
        %v1461 = vadd.f32 %v1457, %v1460
        %vm1462 = vweird.f32 %v1455
        %vm1463 = vweird.f32 %v1457
        %vm1464 = vmor %vm1462, %vm1463
        %v1465 = vsel %vm1464, %v1457, %v1461
        %v1466 = vand.u32 2147483647, %v1455
        %vm1467 = vcmp.eq.f32.partialorder %v1466, 8.507059e+37
        %v1468 = vand.u32 %v1455, 2147483648
        %v1469 = vor.u32 1.1754944e-38, %v1468
        %v1470 = vsel %vm1467, %v1469, %v1465
        %v1471 = vmul.f32 1.0, %v1470
        %v1472 = vrcp.pop %v1456
        %v1473 = vmul.f32 %v1456, %v1472
        %v1474 = vsub.f32 1.0, %v1473
        %v1475 = vmul.f32 %v1472, %v1474
        %v1476 = vadd.f32 %v1472, %v1475
        %vm1477 = vweird.f32 %v1456
        %vm1478 = vweird.f32 %v1472
        %vm1479 = vmor %vm1477, %vm1478
        %v1480 = vsel %vm1479, %v1472, %v1476
        %v1481 = vand.u32 2147483647, %v1456
        %vm1482 = vcmp.eq.f32.partialorder %v1481, 8.507059e+37
        %v1483 = vand.u32 %v1456, 2147483648
        %v1484 = vor.u32 1.1754944e-38, %v1483
        %v1485 = vsel %vm1482, %v1484, %v1480
        %v1486 = vmul.f32 1.0, %v1485
        %v1489 = vrot.slane %v1486, 7
        %v1490 = vsel %vm265, %v1471, %v1489
        %1492 = vst.msk [vmem:[%s203] sm:$0x3] %vm269, %v1490
        %s1493 = sand.u32 %s98, 1
        %s1494 = scalar_lea.sflag [#allocation6], %s1493
        %s1495 = sand.u32 %s98, 1
        %s1496 = smul.addr %s1495, 2
        %s1497 = scalar_lea.vmem [#allocation9], %s1496
        // Predicated region
        $region41: #{tpu_custom_call.1} parent=31 // pred_check
          %p1498 = pneg %p108
        $region42: #{tpu_custom_call.1} parent=31 // pred_check_branch
          %1500 = sbr.rel (%p1498) target = $region44
        $region43: #{tpu_custom_call.1} parent=31 // pred_region
          %1502 = vsyncadd %s1494, 0
          %s1503 = smul.addr %s22, 2
          %s1504 = scalar_lea.hbm %s3, %s1503
          %s1506 = sshll.u32 %s1497, 4
          %s1507 = int_to_ptr.vmem [resolvable:$true] %s1506
          %s1508 = sshll.u32 %s1504, 4
          %s1509 = int_to_ptr.hbm [resolvable:$true] %s1508
          %1511 = dma.vmem_to_hbm [thread:$0]  %s1507, 32, %s1509, %s1494
        $region44: #{tpu_custom_call.1} parent=31 // pred_fallthru
          _
      $region32: #{tpu_custom_call.1} parent=5 // pred_fallthru
        _
      %p1512 = scmp.le.s32.totalorder 2, %s17
      // Predicated region
      $region45: #{tpu_custom_call.1} parent=5 // pred_check
        %p1513 = pneg %p1512
      $region46: #{tpu_custom_call.1} parent=5 // pred_check_branch
        %1515 = sbr.rel (%p1513) target = $region48
      $region47: #{tpu_custom_call.1} parent=5 // pred_region
        %s1516 = ssub.s32 %s17, 2
        // Predicated region
        $region49: #{tpu_custom_call.1} parent=47 // pred_check
          %p1517 = pneg %p114
        $region50: #{tpu_custom_call.1} parent=47 // pred_check_branch
          %1519 = sbr.rel (%p1517) target = $region52
        $region51: #{tpu_custom_call.1} parent=47 // pred_region
          %s1520 = sand.u32 %s99, 1
          %s1521 = scalar_lea.sflag [#allocation6], %s1520
          %s1522 = sand.u32 %s99, 1
          %s1523 = smul.addr %s1522, 2
          %s1524 = scalar_lea.vmem [#allocation9], %s1523
          %1526 = dma.done %s1521, 32
        $region52: #{tpu_custom_call.1} parent=47 // pred_fallthru
          _
      $region48: #{tpu_custom_call.1} parent=5 // pred_fallthru
        _
    $region6: #{tpu_custom_call.1} parent=1 // loop_footer
      %s21 = sadd.s32 1, %s17
    $region7: #{tpu_custom_call.1} parent=1 // loop_footer_branch
      %16 = sbr.rel target = $region3
    $region8: #{tpu_custom_call.1} parent=1 // loop_exit
      _
    %1527 = vsyncpa [#allocation5], 1
    %s1528 = scalar_lea.sflag [#allocation5], 1
    %1529 = vsyncpa %s1528, 1
    %1530 = vsyncpa [#allocation6], 1
    %s1531 = scalar_lea.sflag [#allocation6], 1
    %1532 = vsyncpa %s1531, 1
    %1533 = vsyncpa [#allocation7], 1
    %s1534 = scalar_lea.sflag [#allocation7], 1
    %1535 = vsyncpa %s1534, 1

</llo_original>
